<compile_context>
chip_gen: v5e
topology: v5e:2x2
jax: 0.10.0
libtpu: 0.0.40
codegen_flags: <defaults>
</compile_context>

<pallas_src>
import jax
import jax.numpy as jnp
from jax.experimental import pallas as pl
from jax.experimental.pallas import tpu as pltpu

H1 = 300          # true hidden sizes (PyTorch module)
H2 = 400
H1_PAD = 384      # lane-aligned padded hidden sizes
H2_PAD = 512


def critics_kernel(state_ref, action_ref,
                   w1s_ref, w1a_ref, b1_ref,
                   w2_ref, b2_ref,
                   w3_ref, b3_ref,
                   q_ref):
    # One grid step per critic; every stacked parameter is sliced on its
    # leading axis by the BlockSpec index_map (program_id(0)).
    s_bf = state_ref[...].astype(jnp.bfloat16)
    a_bf = action_ref[...].astype(jnp.bfloat16)

    # layer 1: relu(state @ W1_s + action @ W1_a + b1)   (bf16 MXU, f32 acc)
    h = (jnp.dot(s_bf, w1s_ref[0], preferred_element_type=jnp.float32)
         + jnp.dot(a_bf, w1a_ref[0], preferred_element_type=jnp.float32)
         + b1_ref[0])
    h = jnp.maximum(h, 0.0)                       # f32 bias/ReLU (v5e friendly)

    # layer 2: relu(h @ W2 + b2)
    h = jnp.dot(h.astype(jnp.bfloat16), w2_ref[0],
                preferred_element_type=jnp.float32) + b2_ref[0]
    h = jnp.maximum(h, 0.0)

    # head (400 -> 1): VPU multiply + lane reduction instead of an N=1 matmul.
    q = jnp.sum(h * w3_ref[0], axis=-1, keepdims=True) + b3_ref[0]
    q_ref[0] = q


def _pad_to(x, axis, size):
    pad = size - x.shape[axis]
    if pad <= 0:
        return x
    widths = [(0, 0)] * x.ndim
    widths[axis] = (0, pad)
    return jnp.pad(x, widths)


def pack_params(p, state_size):
    """Stack the two critics, pad hidden dims to lane multiples, cast weights
    to bf16 (biases / head weights stay f32).  Pads are zero => math exact."""
    def stack(a, b):
        return jnp.stack([a, b], axis=0)

    # first layer, split into state / action pieces, pad out-dim 300 -> 384
    w1s = stack(p["w1"][:state_size], p["w1_2"][:state_size])
    w1a = stack(p["w1"][state_size:], p["w1_2"][state_size:])
    w1s = _pad_to(w1s, 2, H1_PAD).astype(jnp.bfloat16)
    w1a = _pad_to(w1a, 2, H1_PAD).astype(jnp.bfloat16)
    b1 = _pad_to(stack(p["b1"], p["b1_2"]), 2, H1_PAD)            # (2,1,384) f32

    # second layer, pad (300,400) -> (384,512)
    w2 = _pad_to(_pad_to(stack(p["w2"], p["w2_2"]), 1, H1_PAD), 2, H2_PAD)
    w2 = w2.astype(jnp.bfloat16)                                  # (2,384,512)
    b2 = _pad_to(stack(p["b2"], p["b2_2"]), 2, H2_PAD)            # (2,1,512) f32

    # head: store as a padded row vector, keep f32 (tiny, used on VPU/XLU)
    w3 = _pad_to(stack(p["w3"].T, p["w3_2"].T), 2, H2_PAD)        # (2,1,512) f32
    b3 = stack(p["b3"], p["b3_2"])                                # (2,1,1)   f32

    return dict(w1s=w1s, w1a=w1a, b1=b1, w2=w2, b2=b2, w3=w3, b3=b3)


def critics_forward(state, action, packed):
    """Equivalent of Critics.forward(state, action) -> (q1, q2)."""
    batch, s_dim = state.shape
    a_dim = action.shape[1]

    def rep(i):          # replicated across the critic grid axis
        return (0, 0)

    def per_critic(i):   # sliced on the leading (critic) axis
        return (i, 0, 0)

    in_specs = [
        pl.BlockSpec((batch, s_dim), rep),                 # state
        pl.BlockSpec((batch, a_dim), rep),                 # action
        pl.BlockSpec((1, s_dim, H1_PAD), per_critic),      # w1s  (bf16)
        pl.BlockSpec((1, a_dim, H1_PAD), per_critic),      # w1a  (bf16)
        pl.BlockSpec((1, 1, H1_PAD), per_critic),          # b1   (f32)
        pl.BlockSpec((1, H1_PAD, H2_PAD), per_critic),     # w2   (bf16)
        pl.BlockSpec((1, 1, H2_PAD), per_critic),          # b2   (f32)
        pl.BlockSpec((1, 1, H2_PAD), per_critic),          # w3   (f32)
        pl.BlockSpec((1, 1, 1), per_critic),               # b3   (f32)
    ]
    out_spec = pl.BlockSpec((1, batch, 1), per_critic)
    out_shape = jax.ShapeDtypeStruct((2, batch, 1), jnp.float32)

    q = pl.pallas_call(
        critics_kernel,
        grid=(2,),
        in_specs=in_specs,
        out_specs=out_spec,
        out_shape=out_shape,
        compiler_params=pltpu.CompilerParams(
            dimension_semantics=("parallel",)),
    )(state, action,
      packed["w1s"], packed["w1a"], packed["b1"],
      packed["w2"], packed["b2"], packed["w3"], packed["b3"])

    return q[0], q[1]


# ----------------------------- setup / reference -----------------------------

def init_linear(key, fan_in, fan_out):
    """Deterministic PyTorch-style Linear init; weight stored as (in, out)."""
    kw, kb = jax.random.split(key)
    bound = 1.0 / jnp.sqrt(jnp.float32(fan_in))
    w = jax.random.uniform(kw, (fan_in, fan_out), jnp.float32, -bound, bound)
    b = jax.random.uniform(kb, (1, fan_out), jnp.float32, -bound, bound)
    return w, b


def make_params(key, state_size, action_size):
    sa_dim = state_size + action_size
    keys = jax.random.split(key, 6)
    w1, b1 = init_linear(keys[0], sa_dim, H1)
    w2, b2 = init_linear(keys[1], H1, H2)
    w3, b3 = init_linear(keys[2], H2, 1)
    w1_2, b1_2 = init_linear(keys[3], sa_dim, H1)
    w2_2, b2_2 = init_linear(keys[4], H1, H2)
    w3_2, b3_2 = init_linear(keys[5], H2, 1)
    return dict(w1=w1, b1=b1, w2=w2, b2=b2, w3=w3, b3=b3,
                w1_2=w1_2, b1_2=b1_2, w2_2=w2_2, b2_2=b2_2,
                w3_2=w3_2, b3_2=b3_2)


def critics_reference_f32(state, action, p):
    """Plain-JAX f32 reference (matches the PyTorch module exactly)."""
    sa = jnp.concatenate([state, action], axis=1)
    h1 = jnp.maximum(sa @ p["w1"] + p["b1"], 0.0)
    h1 = jnp.maximum(h1 @ p["w2"] + p["b2"], 0.0)
    q1 = h1 @ p["w3"] + p["b3"]
    h2 = jnp.maximum(sa @ p["w1_2"] + p["b1_2"], 0.0)
    h2 = jnp.maximum(h2 @ p["w2_2"] + p["b2_2"], 0.0)
    q2 = h2 @ p["w3_2"] + p["b3_2"]
    return q1, q2


def critics_reference_bf16(state, action, p, state_size):
    """Reference with the same bf16 cast points as the kernel."""
    def mm(x, w):
        return jnp.dot(x.astype(jnp.bfloat16), w.astype(jnp.bfloat16),
                       preferred_element_type=jnp.float32)

    def one(w1, b1, w2, b2, w3, b3):
        h = mm(state, w1[:state_size]) + mm(action, w1[state_size:]) + b1
        h = jnp.maximum(h, 0.0)
        h = jnp.maximum(mm(h, w2) + b2, 0.0)
        return jnp.sum(h * w3.T, axis=-1, keepdims=True) + b3

    q1 = one(p["w1"], p["b1"], p["w2"], p["b2"], p["w3"], p["b3"])
    q2 = one(p["w1_2"], p["b1_2"], p["w2_2"], p["b2_2"], p["w3_2"], p["b3_2"])
    return q1, q2


if __name__ == "__main__":
    # BipedalWalker-style sizes: state_size=24, action_size=4, batch=8.
    state_size, action_size, batch = 24, 4, 8

    key = jax.random.PRNGKey(0)
    k_param, k_state, k_action = jax.random.split(key, 3)

    params = make_params(k_param, state_size, action_size)
    packed = pack_params(params, state_size)
    state = jax.random.normal(k_state, (batch, state_size), jnp.float32)
    action = jax.random.normal(k_action, (batch, action_size), jnp.float32)

    q1, q2 = critics_forward(state, action, packed)
    q1 = jax.block_until_ready(q1)
    q2 = jax.block_until_ready(q2)
    assert q1.shape == (batch, 1) and q2.shape == (batch, 1)

    # Tight check against a bf16-matched reference.
    q1_b, q2_b = critics_reference_bf16(state, action, params, state_size)
    assert jnp.allclose(q1, q1_b, atol=1e-3, rtol=1e-3)
    assert jnp.allclose(q2, q2_b, atol=1e-3, rtol=1e-3)

    # Loose check against the exact f32 reference (bf16 weight rounding).
    q1_f, q2_f = critics_reference_f32(state, action, params)
    assert jnp.allclose(q1, q1_f, atol=5e-2, rtol=5e-2)
    assert jnp.allclose(q2, q2_f, atol=5e-2, rtol=5e-2)

    print("KERNEL_OK")
</pallas_src>

<mosaic_0001>
module attributes {stable_mosaic.version = 11 : i64} {
  func.func @critics_kernel(%arg0: i32, %arg1: memref<8x24xf32, #tpu.memory_space<vmem>>, %arg2: memref<8x4xf32, #tpu.memory_space<vmem>>, %arg3: memref<1x24x384xbf16, #tpu.memory_space<vmem>>, %arg4: memref<1x4x384xbf16, #tpu.memory_space<vmem>>, %arg5: memref<1x1x384xf32, #tpu.memory_space<vmem>>, %arg6: memref<1x384x512xbf16, #tpu.memory_space<vmem>>, %arg7: memref<1x1x512xf32, #tpu.memory_space<vmem>>, %arg8: memref<1x1x512xf32, #tpu.memory_space<vmem>>, %arg9: memref<1x1x1xf32, #tpu.memory_space<vmem>>, %arg10: memref<1x8x1xf32, #tpu.memory_space<vmem>>) attributes {dimension_semantics = [#tpu.dimension_semantics<parallel>], iteration_bounds = array<i64: 2>, scalar_prefetch = 0 : i64, scratch_operands = 0 : i64, tpu.core_type = #tpu.core_type<tc>, window_params = [{pipeline_mode = #tpu.pipeline_mode<synchronous>, transform_indices = @transform_0, window_bounds = array<i64: 8, 24>}, {pipeline_mode = #tpu.pipeline_mode<synchronous>, transform_indices = @transform_1, window_bounds = array<i64: 8, 4>}, {transform_indices = @transform_2, window_bounds = array<i64: 1, 24, 384>}, {transform_indices = @transform_3, window_bounds = array<i64: 1, 4, 384>}, {transform_indices = @transform_4, window_bounds = array<i64: 1, 1, 384>}, {transform_indices = @transform_5, window_bounds = array<i64: 1, 384, 512>}, {transform_indices = @transform_6, window_bounds = array<i64: 1, 1, 512>}, {transform_indices = @transform_7, window_bounds = array<i64: 1, 1, 512>}, {transform_indices = @transform_8, window_bounds = array<i64: 1, 1, 1>}, {transform_indices = @transform_9, window_bounds = array<i64: 1, 8, 1>}]} {
    %c0 = arith.constant 0 : index
    %c0_0 = arith.constant 0 : index
    %0 = vector.load %arg1[%c0, %c0_0] : memref<8x24xf32, #tpu.memory_space<vmem>>, vector<8x24xf32>
    %1 = arith.truncf %0 : vector<8x24xf32> to vector<8x24xbf16>
    %c0_1 = arith.constant 0 : index
    %c0_2 = arith.constant 0 : index
    %2 = vector.load %arg2[%c0_1, %c0_2] : memref<8x4xf32, #tpu.memory_space<vmem>>, vector<8x4xf32>
    %3 = arith.truncf %2 : vector<8x4xf32> to vector<8x4xbf16>
    %c0_3 = arith.constant 0 : index
    %c0_4 = arith.constant 0 : index
    %c0_5 = arith.constant 0 : index
    %4 = vector.load %arg3[%c0_3, %c0_4, %c0_5] : memref<1x24x384xbf16, #tpu.memory_space<vmem>>, vector<1x24x384xbf16>
    %5 = vector.shape_cast %4 : vector<1x24x384xbf16> to vector<24x384xbf16>
    %cst = arith.constant dense<0.000000e+00> : vector<8x384xf32>
    %6 = tpu.matmul %1, %5, %cst {dimension_numbers = #tpu.dot_dimension_numbers<[1], [0], [0], [1], [0, 0, 1, 1], [], []>} : vector<8x24xbf16>, vector<24x384xbf16>, vector<8x384xf32> -> vector<8x384xf32>
    %c0_6 = arith.constant 0 : index
    %c0_7 = arith.constant 0 : index
    %c0_8 = arith.constant 0 : index
    %7 = vector.load %arg4[%c0_6, %c0_7, %c0_8] : memref<1x4x384xbf16, #tpu.memory_space<vmem>>, vector<1x4x384xbf16>
    %8 = vector.shape_cast %7 : vector<1x4x384xbf16> to vector<4x384xbf16>
    %cst_9 = arith.constant dense<0.000000e+00> : vector<8x384xf32>
    %9 = tpu.matmul %3, %8, %cst_9 {dimension_numbers = #tpu.dot_dimension_numbers<[1], [0], [0], [1], [0, 0, 1, 1], [], []>} : vector<8x4xbf16>, vector<4x384xbf16>, vector<8x384xf32> -> vector<8x384xf32>
    %10 = arith.addf %6, %9 : vector<8x384xf32>
    %c0_10 = arith.constant 0 : index
    %c0_11 = arith.constant 0 : index
    %c0_12 = arith.constant 0 : index
    %11 = vector.load %arg5[%c0_10, %c0_11, %c0_12] : memref<1x1x384xf32, #tpu.memory_space<vmem>>, vector<1x1x384xf32>
    %12 = vector.shape_cast %11 : vector<1x1x384xf32> to vector<1x384xf32>
    %13 = vector.broadcast %12 : vector<1x384xf32> to vector<8x384xf32>
    %14 = arith.addf %10, %13 : vector<8x384xf32>
    %cst_13 = arith.constant 0.000000e+00 : f32
    %15 = vector.broadcast %cst_13 : f32 to vector<8x384xf32>
    %16 = arith.maximumf %14, %15 : vector<8x384xf32>
    %17 = arith.truncf %16 : vector<8x384xf32> to vector<8x384xbf16>
    %c0_14 = arith.constant 0 : index
    %c0_15 = arith.constant 0 : index
    %c0_16 = arith.constant 0 : index
    %18 = vector.load %arg6[%c0_14, %c0_15, %c0_16] : memref<1x384x512xbf16, #tpu.memory_space<vmem>>, vector<1x384x512xbf16>
    %19 = vector.shape_cast %18 : vector<1x384x512xbf16> to vector<384x512xbf16>
    %cst_17 = arith.constant dense<0.000000e+00> : vector<8x512xf32>
    %20 = tpu.matmul %17, %19, %cst_17 {dimension_numbers = #tpu.dot_dimension_numbers<[1], [0], [0], [1], [0, 0, 1, 1], [], []>} : vector<8x384xbf16>, vector<384x512xbf16>, vector<8x512xf32> -> vector<8x512xf32>
    %c0_18 = arith.constant 0 : index
    %c0_19 = arith.constant 0 : index
    %c0_20 = arith.constant 0 : index
    %21 = vector.load %arg7[%c0_18, %c0_19, %c0_20] : memref<1x1x512xf32, #tpu.memory_space<vmem>>, vector<1x1x512xf32>
    %22 = vector.shape_cast %21 : vector<1x1x512xf32> to vector<1x512xf32>
    %23 = vector.broadcast %22 : vector<1x512xf32> to vector<8x512xf32>
    %24 = arith.addf %20, %23 : vector<8x512xf32>
    %cst_21 = arith.constant 0.000000e+00 : f32
    %25 = vector.broadcast %cst_21 : f32 to vector<8x512xf32>
    %26 = arith.maximumf %24, %25 : vector<8x512xf32>
    %c0_22 = arith.constant 0 : index
    %c0_23 = arith.constant 0 : index
    %c0_24 = arith.constant 0 : index
    %27 = vector.load %arg8[%c0_22, %c0_23, %c0_24] : memref<1x1x512xf32, #tpu.memory_space<vmem>>, vector<1x1x512xf32>
    %28 = vector.shape_cast %27 : vector<1x1x512xf32> to vector<1x512xf32>
    %29 = vector.broadcast %28 : vector<1x512xf32> to vector<8x512xf32>
    %30 = arith.mulf %26, %29 : vector<8x512xf32>
    %cst_25 = arith.constant dense<0.000000e+00> : vector<8xf32>
    %31 = vector.multi_reduction <add>, %30, %cst_25 [1] : vector<8x512xf32> to vector<8xf32>
    %32 = vector.shape_cast %31 : vector<8xf32> to vector<8x1xf32>
    %c0_26 = arith.constant 0 : index
    %c0_27 = arith.constant 0 : index
    %c0_28 = arith.constant 0 : index
    %33 = vector.load %arg9[%c0_26, %c0_27, %c0_28] : memref<1x1x1xf32, #tpu.memory_space<vmem>>, vector<1x1x1xf32>
    %34 = vector.shape_cast %33 : vector<1x1x1xf32> to vector<1x1xf32>
    %35 = vector.broadcast %34 : vector<1x1xf32> to vector<8x1xf32>
    %36 = arith.addf %32, %35 : vector<8x1xf32>
    %c0_29 = arith.constant 0 : index
    %c0_30 = arith.constant 0 : index
    %c0_31 = arith.constant 0 : index
    %37 = vector.load %arg10[%c0_29, %c0_30, %c0_31] : memref<1x8x1xf32, #tpu.memory_space<vmem>>, vector<1x8x1xf32>
    %38 = vector.shape_cast %37 : vector<1x8x1xf32> to vector<8x1xf32>
    %39 = vector.shape_cast %36 : vector<8x1xf32> to vector<1x8x1xf32>
    tpu.vector_store %arg10[%c0_29, %c0_30, %c0_31], %39 {strides = array<i32>} : memref<1x8x1xf32, #tpu.memory_space<vmem>>, vector<1x8x1xf32>,
    return
  }
  func.func @transform_0(%arg0: i32) -> (i32, i32) {
    %c0_i32 = arith.constant 0 : i32
    %c0_i32_0 = arith.constant 0 : i32
    %c0_i32_1 = arith.constant 0 : i32
    return %c0_i32, %c0_i32_0 : i32, i32
  }
  func.func @transform_1(%arg0: i32) -> (i32, i32) {
    %c0_i32 = arith.constant 0 : i32
    %c0_i32_0 = arith.constant 0 : i32
    %c0_i32_1 = arith.constant 0 : i32
    return %c0_i32, %c0_i32_0 : i32, i32
  }
  func.func @transform_2(%arg0: i32) -> (i32, i32, i32) {
    %c0_i32 = arith.constant 0 : i32
    %c0_i32_0 = arith.constant 0 : i32
    %c0_i32_1 = arith.constant 0 : i32
    return %arg0, %c0_i32, %c0_i32_0 : i32, i32, i32
  }
  func.func @transform_3(%arg0: i32) -> (i32, i32, i32) {
    %c0_i32 = arith.constant 0 : i32
    %c0_i32_0 = arith.constant 0 : i32
    %c0_i32_1 = arith.constant 0 : i32
    return %arg0, %c0_i32, %c0_i32_0 : i32, i32, i32
  }
  func.func @transform_4(%arg0: i32) -> (i32, i32, i32) {
    %c0_i32 = arith.constant 0 : i32
    %c0_i32_0 = arith.constant 0 : i32
    %c0_i32_1 = arith.constant 0 : i32
    return %arg0, %c0_i32, %c0_i32_0 : i32, i32, i32
  }
  func.func @transform_5(%arg0: i32) -> (i32, i32, i32) {
    %c0_i32 = arith.constant 0 : i32
    %c0_i32_0 = arith.constant 0 : i32
    %c0_i32_1 = arith.constant 0 : i32
    return %arg0, %c0_i32, %c0_i32_0 : i32, i32, i32
  }
  func.func @transform_6(%arg0: i32) -> (i32, i32, i32) {
    %c0_i32 = arith.constant 0 : i32
    %c0_i32_0 = arith.constant 0 : i32
    %c0_i32_1 = arith.constant 0 : i32
    return %arg0, %c0_i32, %c0_i32_0 : i32, i32, i32
  }
  func.func @transform_7(%arg0: i32) -> (i32, i32, i32) {
    %c0_i32 = arith.constant 0 : i32
    %c0_i32_0 = arith.constant 0 : i32
    %c0_i32_1 = arith.constant 0 : i32
    return %arg0, %c0_i32, %c0_i32_0 : i32, i32, i32
  }
  func.func @transform_8(%arg0: i32) -> (i32, i32, i32) {
    %c0_i32 = arith.constant 0 : i32
    %c0_i32_0 = arith.constant 0 : i32
    %c0_i32_1 = arith.constant 0 : i32
    return %arg0, %c0_i32, %c0_i32_0 : i32, i32, i32
  }
  func.func @transform_9(%arg0: i32) -> (i32, i32, i32) {
    %c0_i32 = arith.constant 0 : i32
    %c0_i32_0 = arith.constant 0 : i32
    %c0_i32_1 = arith.constant 0 : i32
    return %arg0, %c0_i32, %c0_i32_0 : i32, i32, i32
  }
}

</mosaic_0001>

<llo_original>
// kernel: tpu_custom_call.1
$region0: #{tpu_custom_call.1}
  #allocation0 [shape = 'u32[]', space=smem, size = 0x4, offset = 0x4, fixed_abs, tag = 'smem constant byte address 0x4 - core index']
  #allocation1 [shape = 'u32[72,128]{1,0:T(1,128)}', space=vmem, size = 0x9000, scoped, tag = 'internal scratch']
  %s0 = inlined_call_operand.hbm [shape: f32[8,24], index: 0, kind: input, shape index: {}]
  %s1 = inlined_call_operand.vmem [shape: f32[8,4], index: 1, kind: input, shape index: {}]
  %s2 = inlined_call_operand.hbm [shape: bf16[2,24,384], index: 2, kind: input, shape index: {}]
  %s3 = inlined_call_operand.vmem [shape: bf16[2,4,384], index: 3, kind: input, shape index: {}]
  %s4 = inlined_call_operand.hbm [shape: f32[2,1,384], index: 4, kind: input, shape index: {}]
  %s5 = inlined_call_operand.hbm [shape: bf16[2,384,512], index: 5, kind: input, shape index: {}]
  %s6 = inlined_call_operand.hbm [shape: f32[2,1,512], index: 6, kind: input, shape index: {}]
  %s7 = inlined_call_operand.hbm [shape: f32[2,1,512], index: 7, kind: input, shape index: {}]
  %s8 = inlined_call_operand.vmem [shape: f32[2,1,1], index: 8, kind: input, shape index: {}]
  %s9 = inlined_call_operand.vmem [shape: f32[2,8,1], index: 9, kind: output, shape index: {}]
  %s10 = sld [smem:[#allocation0]]
  $region93: #{tpu_custom_call.1} parent=0
    _
  %s12 = ssub.s32 1, %s10
  %s13 = scalar_select 0, %s12, %s10
  $region1: #{tpu_custom_call.1} parent=0
    #allocation2 [shape = 'u8[4096]{0}', space=vmem, size = 0x1000, scoped, tag = 'input window, operand 0, single buffered']
    #allocation3 [shape = 's32[2]{0}', space=sflag, size = 0x8, scoped, tag = 'scoped memory for tpu_custom_call.1']
    #allocation4 [shape = 'u8[36864]{0}', space=vmem, size = 0x9000, scoped, tag = 'input window, operand 2']
    #allocation5 [shape = 's32[2]{0}', space=sflag, size = 0x8, scoped, tag = 'scoped memory for tpu_custom_call.1']
    #allocation6 [shape = 'u8[3072]{0}', space=vmem, size = 0xc00, scoped, tag = 'input window, operand 4']
    #allocation7 [shape = 'u8[786432]{0}', space=vmem, size = 0xc0000, scoped, tag = 'input window, operand 5']
    #allocation8 [shape = 's32[2]{0}', space=sflag, size = 0x8, scoped, tag = 'scoped memory for tpu_custom_call.1']
    #allocation9 [shape = 'u8[4096]{0}', space=vmem, size = 0x1000, scoped, tag = 'input window, operand 6']
    #allocation10 [shape = 'u8[4096]{0}', space=vmem, size = 0x1000, scoped, tag = 'input window, operand 7']
    #allocation11 [shape = 's32[2]{0}', space=sflag, size = 0x8, scoped, tag = 'scoped memory for tpu_custom_call.1']
    %14 = vsyncpa [#allocation3], 0
    %15 = vsyncpa [#allocation5], 0
    %s16 = scalar_lea.sflag [#allocation5], 1
    %17 = vsyncpa %s16, 0
    %18 = vsyncpa [#allocation8], 0
    %s19 = scalar_lea.sflag [#allocation8], 1
    %20 = vsyncpa %s19, 0
    %21 = vsyncpa [#allocation11], 0
    %s22 = scalar_lea.sflag [#allocation11], 1
    %23 = vsyncpa %s22, 0
    loop: start=0, step=1, limit=4
    $region2: #{tpu_custom_call.1} parent=1 // loop_pre_header
      _
    $region3: #{tpu_custom_call.1} parent=1 // loop_header
      %s25 = sphi 0, %s29
      %p26 = scmp.ge.s32.totalorder %s25, 4
      %s33 = sphi 0, %s33
      %s35 = sphi 0, %s33
      %s36 = sphi 0, %s35
      %s50 = sphi 0, %s36
      %s54 = sphi 0, %s54
      %s56 = sphi 0, %s54
      %s57 = sphi 0, %s56
      %s71 = sphi 0, %s57
      %s77 = sphi 0, %s79
      %s80 = sphi 0, %s77
      %s81 = sphi 0, %s80
      %s97 = sphi 0, %s81
      %s103 = sphi 0, %s105
      %s106 = sphi 0, %s103
      %s107 = sphi 0, %s106
      %s123 = sphi 0, %s107
      %s129 = sphi 0, %s131
      %s132 = sphi 0, %s129
      %s133 = sphi 0, %s132
      %s149 = sphi 0, %s133
      %s155 = sphi 0, %s157
      %s158 = sphi 0, %s155
      %s159 = sphi 0, %s158
      %s175 = sphi 0, %s159
      %s181 = sphi 0, %s183
      %s184 = sphi 0, %s181
      %s185 = sphi 0, %s184
      %s201 = sphi 0, %s185
      %s207 = sphi 0, %s209
      %s210 = sphi 0, %s207
      %s211 = sphi 0, %s210
      %s227 = sphi 0, %s211
      %s233 = sphi 0, %s235
      %s236 = sphi 0, %s233
      %s237 = sphi 0, %s236
      %s253 = sphi 0, %s237
      %s259 = sphi 0, %s261
      %s262 = sphi 0, %s259
      %s263 = sphi 0, %s262
      %s279 = sphi 0, %s263
    $region4: #{tpu_custom_call.1} parent=1 // loop_header_branch
      %28 = sbr.rel (%p26) target = $region8
    $region5: #{tpu_custom_call.1} parent=1 // loop_body
      %s30 = ssub.s32 %s25, 1
      %s31 = ssub.s32 %s25, 2
      %s32 = sadd.s32 %s25, 1
      %s34 = sadd.s32 %s33, 1
      %p37 = scmp.eq.s32.totalorder %s25, 1
      %p38 = scmp.ne.s32.totalorder %s33, %s35
      %p39 = scmp.eq.s32.totalorder %s25, 0
      %p40 = por %p38, %p39
      %p41 = scmp.ne.s32.totalorder %s33, %s35
      %p42 = scmp.eq.s32.totalorder %s30, 1
      %p43 = por %p41, %p42
      %p44 = scmp.ne.s32.totalorder %s35, %s36
      %p45 = scmp.eq.s32.totalorder %s30, 0
      %p46 = por %p44, %p45
      %p47 = scmp.ne.s32.totalorder %s35, %s36
      %p48 = scmp.eq.s32.totalorder %s31, 1
      %p49 = por %p47, %p48
      %p51 = scmp.ne.s32.totalorder %s36, %s50
      %p52 = scmp.eq.s32.totalorder %s31, 0
      %p53 = por %p51, %p52
      %s55 = sadd.s32 %s54, 1
      %p58 = scmp.eq.s32.totalorder %s25, 1
      %p59 = scmp.ne.s32.totalorder %s54, %s56
      %p60 = scmp.eq.s32.totalorder %s25, 0
      %p61 = por %p59, %p60
      %p62 = scmp.ne.s32.totalorder %s54, %s56
      %p63 = scmp.eq.s32.totalorder %s30, 1
      %p64 = por %p62, %p63
      %p65 = scmp.ne.s32.totalorder %s56, %s57
      %p66 = scmp.eq.s32.totalorder %s30, 0
      %p67 = por %p65, %p66
      %p68 = scmp.ne.s32.totalorder %s56, %s57
      %p69 = scmp.eq.s32.totalorder %s31, 1
      %p70 = por %p68, %p69
      %p72 = scmp.ne.s32.totalorder %s57, %s71
      %p73 = scmp.eq.s32.totalorder %s31, 0
      %p74 = por %p72, %p73
      %s75 = ssub.s32 %s25, %s32
      %p76 = scmp.eq.s32.totalorder %s75, 0
      %s78 = sadd.s32 %s77, 1
      %s79 = scalar_select %p76, %s77, %s78
      %p82 = pneg %p76
      %p83 = scmp.eq.s32.totalorder %s25, 1
      %p84 = por %p82, %p83
      %p85 = scmp.ne.s32.totalorder %s77, %s80
      %p86 = scmp.eq.s32.totalorder %s25, 0
      %p87 = por %p85, %p86
      %p88 = scmp.ne.s32.totalorder %s77, %s80
      %p89 = scmp.eq.s32.totalorder %s30, 1
      %p90 = por %p88, %p89
      %p91 = scmp.ne.s32.totalorder %s80, %s81
      %p92 = scmp.eq.s32.totalorder %s30, 0
      %p93 = por %p91, %p92
      %p94 = scmp.ne.s32.totalorder %s80, %s81
      %p95 = scmp.eq.s32.totalorder %s31, 1
      %p96 = por %p94, %p95
      %p98 = scmp.ne.s32.totalorder %s81, %s97
      %p99 = scmp.eq.s32.totalorder %s31, 0
      %p100 = por %p98, %p99
      %s101 = ssub.s32 %s25, %s32
      %p102 = scmp.eq.s32.totalorder %s101, 0
      %s104 = sadd.s32 %s103, 1
      %s105 = scalar_select %p102, %s103, %s104
      %p108 = pneg %p102
      %p109 = scmp.eq.s32.totalorder %s25, 1
      %p110 = por %p108, %p109
      %p111 = scmp.ne.s32.totalorder %s103, %s106
      %p112 = scmp.eq.s32.totalorder %s25, 0
      %p113 = por %p111, %p112
      %p114 = scmp.ne.s32.totalorder %s103, %s106
      %p115 = scmp.eq.s32.totalorder %s30, 1
      %p116 = por %p114, %p115
      %p117 = scmp.ne.s32.totalorder %s106, %s107
      %p118 = scmp.eq.s32.totalorder %s30, 0
      %p119 = por %p117, %p118
      %p120 = scmp.ne.s32.totalorder %s106, %s107
      %p121 = scmp.eq.s32.totalorder %s31, 1
      %p122 = por %p120, %p121
      %p124 = scmp.ne.s32.totalorder %s107, %s123
      %p125 = scmp.eq.s32.totalorder %s31, 0
      %p126 = por %p124, %p125
      %s127 = ssub.s32 %s25, %s32
      %p128 = scmp.eq.s32.totalorder %s127, 0
      %s130 = sadd.s32 %s129, 1
      %s131 = scalar_select %p128, %s129, %s130
      %p134 = pneg %p128
      %p135 = scmp.eq.s32.totalorder %s25, 1
      %p136 = por %p134, %p135
      %p137 = scmp.ne.s32.totalorder %s129, %s132
      %p138 = scmp.eq.s32.totalorder %s25, 0
      %p139 = por %p137, %p138
      %p140 = scmp.ne.s32.totalorder %s129, %s132
      %p141 = scmp.eq.s32.totalorder %s30, 1
      %p142 = por %p140, %p141
      %p143 = scmp.ne.s32.totalorder %s132, %s133
      %p144 = scmp.eq.s32.totalorder %s30, 0
      %p145 = por %p143, %p144
      %p146 = scmp.ne.s32.totalorder %s132, %s133
      %p147 = scmp.eq.s32.totalorder %s31, 1
      %p148 = por %p146, %p147
      %p150 = scmp.ne.s32.totalorder %s133, %s149
      %p151 = scmp.eq.s32.totalorder %s31, 0
      %p152 = por %p150, %p151
      %s153 = ssub.s32 %s25, %s32
      %p154 = scmp.eq.s32.totalorder %s153, 0
      %s156 = sadd.s32 %s155, 1
      %s157 = scalar_select %p154, %s155, %s156
      %p160 = pneg %p154
      %p161 = scmp.eq.s32.totalorder %s25, 1
      %p162 = por %p160, %p161
      %p163 = scmp.ne.s32.totalorder %s155, %s158
      %p164 = scmp.eq.s32.totalorder %s25, 0
      %p165 = por %p163, %p164
      %p166 = scmp.ne.s32.totalorder %s155, %s158
      %p167 = scmp.eq.s32.totalorder %s30, 1
      %p168 = por %p166, %p167
      %p169 = scmp.ne.s32.totalorder %s158, %s159
      %p170 = scmp.eq.s32.totalorder %s30, 0
      %p171 = por %p169, %p170
      %p172 = scmp.ne.s32.totalorder %s158, %s159
      %p173 = scmp.eq.s32.totalorder %s31, 1
      %p174 = por %p172, %p173
      %p176 = scmp.ne.s32.totalorder %s159, %s175
      %p177 = scmp.eq.s32.totalorder %s31, 0
      %p178 = por %p176, %p177
      %s179 = ssub.s32 %s25, %s32
      %p180 = scmp.eq.s32.totalorder %s179, 0
      %s182 = sadd.s32 %s181, 1
      %s183 = scalar_select %p180, %s181, %s182
      %p186 = pneg %p180
      %p187 = scmp.eq.s32.totalorder %s25, 1
      %p188 = por %p186, %p187
      %p189 = scmp.ne.s32.totalorder %s181, %s184
      %p190 = scmp.eq.s32.totalorder %s25, 0
      %p191 = por %p189, %p190
      %p192 = scmp.ne.s32.totalorder %s181, %s184
      %p193 = scmp.eq.s32.totalorder %s30, 1
      %p194 = por %p192, %p193
      %p195 = scmp.ne.s32.totalorder %s184, %s185
      %p196 = scmp.eq.s32.totalorder %s30, 0
      %p197 = por %p195, %p196
      %p198 = scmp.ne.s32.totalorder %s184, %s185
      %p199 = scmp.eq.s32.totalorder %s31, 1
      %p200 = por %p198, %p199
      %p202 = scmp.ne.s32.totalorder %s185, %s201
      %p203 = scmp.eq.s32.totalorder %s31, 0
      %p204 = por %p202, %p203
      %s205 = ssub.s32 %s25, %s32
      %p206 = scmp.eq.s32.totalorder %s205, 0
      %s208 = sadd.s32 %s207, 1
      %s209 = scalar_select %p206, %s207, %s208
      %p212 = pneg %p206
      %p213 = scmp.eq.s32.totalorder %s25, 1
      %p214 = por %p212, %p213
      %p215 = scmp.ne.s32.totalorder %s207, %s210
      %p216 = scmp.eq.s32.totalorder %s25, 0
      %p217 = por %p215, %p216
      %p218 = scmp.ne.s32.totalorder %s207, %s210
      %p219 = scmp.eq.s32.totalorder %s30, 1
      %p220 = por %p218, %p219
      %p221 = scmp.ne.s32.totalorder %s210, %s211
      %p222 = scmp.eq.s32.totalorder %s30, 0
      %p223 = por %p221, %p222
      %p224 = scmp.ne.s32.totalorder %s210, %s211
      %p225 = scmp.eq.s32.totalorder %s31, 1
      %p226 = por %p224, %p225
      %p228 = scmp.ne.s32.totalorder %s211, %s227
      %p229 = scmp.eq.s32.totalorder %s31, 0
      %p230 = por %p228, %p229
      %s231 = ssub.s32 %s25, %s32
      %p232 = scmp.eq.s32.totalorder %s231, 0
      %s234 = sadd.s32 %s233, 1
      %s235 = scalar_select %p232, %s233, %s234
      %p238 = pneg %p232
      %p239 = scmp.eq.s32.totalorder %s25, 1
      %p240 = por %p238, %p239
      %p241 = scmp.ne.s32.totalorder %s233, %s236
      %p242 = scmp.eq.s32.totalorder %s25, 0
      %p243 = por %p241, %p242
      %p244 = scmp.ne.s32.totalorder %s233, %s236
      %p245 = scmp.eq.s32.totalorder %s30, 1
      %p246 = por %p244, %p245
      %p247 = scmp.ne.s32.totalorder %s236, %s237
      %p248 = scmp.eq.s32.totalorder %s30, 0
      %p249 = por %p247, %p248
      %p250 = scmp.ne.s32.totalorder %s236, %s237
      %p251 = scmp.eq.s32.totalorder %s31, 1
      %p252 = por %p250, %p251
      %p254 = scmp.ne.s32.totalorder %s237, %s253
      %p255 = scmp.eq.s32.totalorder %s31, 0
      %p256 = por %p254, %p255
      %s257 = ssub.s32 %s25, %s32
      %p258 = scmp.eq.s32.totalorder %s257, 0
      %s260 = sadd.s32 %s259, 1
      %s261 = scalar_select %p258, %s259, %s260
      %p264 = pneg %p258
      %p265 = scmp.eq.s32.totalorder %s25, 1
      %p266 = por %p264, %p265
      %p267 = scmp.ne.s32.totalorder %s259, %s262
      %p268 = scmp.eq.s32.totalorder %s25, 0
      %p269 = por %p267, %p268
      %p270 = scmp.ne.s32.totalorder %s259, %s262
      %p271 = scmp.eq.s32.totalorder %s30, 1
      %p272 = por %p270, %p271
      %p273 = scmp.ne.s32.totalorder %s262, %s263
      %p274 = scmp.eq.s32.totalorder %s30, 0
      %p275 = por %p273, %p274
      %p276 = scmp.ne.s32.totalorder %s262, %s263
      %p277 = scmp.eq.s32.totalorder %s31, 1
      %p278 = por %p276, %p277
      %p280 = scmp.ne.s32.totalorder %s263, %s279
      %p281 = scmp.eq.s32.totalorder %s31, 0
      %p282 = por %p280, %p281
      %p283 = scmp.le.s32.totalorder 1, %s25
      %p284 = scmp.lt.s32.totalorder %s25, 3
      %p285 = pnand %p283, %p284
      %p286 = pneg %p285
      // Predicated region
      $region9: #{tpu_custom_call.1} parent=5 // pred_check
        _
      $region10: #{tpu_custom_call.1} parent=5 // pred_check_branch
        %288 = sbr.rel (%p285) target = $region12
      $region11: #{tpu_custom_call.1} parent=5 // pred_region
        %s289 = ssub.s32 %s25, 1
        // Predicated region
        $region13: #{tpu_custom_call.1} parent=11 // pred_check
          %p290 = pneg %p46
        $region14: #{tpu_custom_call.1} parent=11 // pred_check_branch
          %292 = sbr.rel (%p290) target = $region16
        $region15: #{tpu_custom_call.1} parent=11 // pred_region
          %294 = vsyncadd [#allocation3], 0
          %s296 = sshll.u32 %s0, 4
          %s297 = int_to_ptr.hbm [resolvable:$true] %s296
          %s298 = sshll.u32 [#allocation2], 4
          %s299 = int_to_ptr.vmem [resolvable:$true] %s298
          %301 = dma.hbm_to_vmem [thread:$0]  %s297, 128, %s299, [#allocation3]
        $region16: #{tpu_custom_call.1} parent=11 // pred_fallthru
          _
        // Predicated region
        $region17: #{tpu_custom_call.1} parent=11 // pred_check
          %p302 = pneg %p67
        $region18: #{tpu_custom_call.1} parent=11 // pred_check_branch
          %304 = sbr.rel (%p302) target = $region20
        $region19: #{tpu_custom_call.1} parent=11 // pred_region
          _
        $region20: #{tpu_custom_call.1} parent=11 // pred_fallthru
          _
      $region12: #{tpu_custom_call.1} parent=5 // pred_fallthru
        _
      %p305 = scmp.lt.s32.totalorder %s25, 2
      // Predicated region
      $region21: #{tpu_custom_call.1} parent=5 // pred_check
        %p306 = pneg %p305
      $region22: #{tpu_custom_call.1} parent=5 // pred_check_branch
        %308 = sbr.rel (%p306) target = $region24
      $region23: #{tpu_custom_call.1} parent=5 // pred_region
        // Predicated region
        $region25: #{tpu_custom_call.1} parent=23 // pred_check
          %p309 = pneg %p87
        $region26: #{tpu_custom_call.1} parent=23 // pred_check_branch
          %311 = sbr.rel (%p309) target = $region28
        $region27: #{tpu_custom_call.1} parent=23 // pred_region
          %s312 = sand.u32 %s25, 1
          %s313 = scalar_lea.sflag [#allocation5], %s312
          %s314 = sand.u32 %s77, 1
          %s315 = smul.addr %s314, 36
          %s316 = scalar_lea.vmem [#allocation4], %s315
          %318 = vsyncadd %s313, 0
          %s319 = smul.addr %s25, 9
          %s320 = smul.addr %s319, 4
          %s321 = scalar_lea.hbm %s2, %s320
          %s322 = sshll.u32 %s321, 4
          %s323 = int_to_ptr.hbm [resolvable:$true] %s322
          %s324 = sshll.u32 %s316, 4
          %s325 = int_to_ptr.vmem [resolvable:$true] %s324
          %330 = dma.hbm_to_vmem [thread:$0]  %s323, 576, %s325, %s313, 192, 192, 12
        $region28: #{tpu_custom_call.1} parent=23 // pred_fallthru
          _
        // Predicated region
        $region29: #{tpu_custom_call.1} parent=23 // pred_check
          %p331 = pneg %p113
        $region30: #{tpu_custom_call.1} parent=23 // pred_check_branch
          %333 = sbr.rel (%p331) target = $region32
        $region31: #{tpu_custom_call.1} parent=23 // pred_region
          %p334 = scmp.lt.s32.totalorder %s25, 1
          %s335 = scalar_select %p334, %s25, 1
          %s336 = smul.addr %s335, 3
          %s337 = smul.addr %s336, 2
          %s338 = scalar_lea.vmem %s3, %s337
        $region32: #{tpu_custom_call.1} parent=23 // pred_fallthru
          _
        // Predicated region
        $region33: #{tpu_custom_call.1} parent=23 // pred_check
          %p339 = pneg %p139
        $region34: #{tpu_custom_call.1} parent=23 // pred_check_branch
          %341 = sbr.rel (%p339) target = $region36
        $region35: #{tpu_custom_call.1} parent=23 // pred_region
          %s342 = sand.u32 %s25, 1
          %s343 = scalar_lea.sflag [#allocation5], %s342
          %s344 = sand.u32 %s129, 1
          %s345 = smul.addr %s344, 3
          %s346 = scalar_lea.vmem [#allocation6], %s345
          %348 = vsyncadd %s343, 0
          %s349 = smul.addr %s25, 3
          %s350 = scalar_lea.hbm %s4, %s349
          %s352 = sshll.u32 %s350, 4
          %s353 = int_to_ptr.hbm [resolvable:$true] %s352
          %s354 = sshll.u32 %s346, 4
          %s355 = int_to_ptr.vmem [resolvable:$true] %s354
          %357 = dma.hbm_to_vmem [thread:$0]  %s353, 48, %s355, %s343
        $region36: #{tpu_custom_call.1} parent=23 // pred_fallthru
          _
        // Predicated region
        $region37: #{tpu_custom_call.1} parent=23 // pred_check
          %p358 = pneg %p165
        $region38: #{tpu_custom_call.1} parent=23 // pred_check_branch
          %360 = sbr.rel (%p358) target = $region40
        $region39: #{tpu_custom_call.1} parent=23 // pred_region
          %s361 = sand.u32 %s25, 1
          %s362 = scalar_lea.sflag [#allocation8], %s361
          %s363 = sand.u32 %s155, 1
          %s364 = smul.addr %s363, 768
          %s365 = scalar_lea.vmem [#allocation7], %s364
          %367 = vsyncadd %s362, 0
          %s368 = smul.addr %s25, 192
          %s369 = smul.addr %s368, 4
          %s370 = scalar_lea.hbm %s5, %s369
          %s371 = sshll.u32 %s370, 4
          %s372 = int_to_ptr.hbm [resolvable:$true] %s371
          %s373 = sshll.u32 %s365, 4
          %s374 = int_to_ptr.vmem [resolvable:$true] %s373
          %379 = dma.hbm_to_vmem [thread:$0]  %s372, 12288, %s374, %s362, 256, 256, 16
        $region40: #{tpu_custom_call.1} parent=23 // pred_fallthru
          _
        // Predicated region
        $region41: #{tpu_custom_call.1} parent=23 // pred_check
          %p380 = pneg %p191
        $region42: #{tpu_custom_call.1} parent=23 // pred_check_branch
          %382 = sbr.rel (%p380) target = $region44
        $region43: #{tpu_custom_call.1} parent=23 // pred_region
          %s383 = sand.u32 %s25, 1
          %s384 = scalar_lea.sflag [#allocation8], %s383
          %s385 = sand.u32 %s181, 1
          %s386 = smul.addr %s385, 4
          %s387 = scalar_lea.vmem [#allocation9], %s386
          %389 = vsyncadd %s384, 0
          %s390 = smul.addr %s25, 4
          %s391 = scalar_lea.hbm %s6, %s390
          %s393 = sshll.u32 %s391, 4
          %s394 = int_to_ptr.hbm [resolvable:$true] %s393
          %s395 = sshll.u32 %s387, 4
          %s396 = int_to_ptr.vmem [resolvable:$true] %s395
          %398 = dma.hbm_to_vmem [thread:$0]  %s394, 64, %s396, %s384
        $region44: #{tpu_custom_call.1} parent=23 // pred_fallthru
          _
        // Predicated region
        $region45: #{tpu_custom_call.1} parent=23 // pred_check
          %p399 = pneg %p217
        $region46: #{tpu_custom_call.1} parent=23 // pred_check_branch
          %401 = sbr.rel (%p399) target = $region48
        $region47: #{tpu_custom_call.1} parent=23 // pred_region
          %s402 = sand.u32 %s207, 1
          %s403 = scalar_lea.sflag [#allocation11], %s402
          %s404 = sand.u32 %s207, 1
          %s405 = smul.addr %s404, 4
          %s406 = scalar_lea.vmem [#allocation10], %s405
          %408 = vsyncadd %s403, 0
          %s409 = smul.addr %s25, 4
          %s410 = scalar_lea.hbm %s7, %s409
          %s412 = sshll.u32 %s410, 4
          %s413 = int_to_ptr.hbm [resolvable:$true] %s412
          %s414 = sshll.u32 %s406, 4
          %s415 = int_to_ptr.vmem [resolvable:$true] %s414
          %417 = dma.hbm_to_vmem [thread:$0]  %s413, 64, %s415, %s403
        $region48: #{tpu_custom_call.1} parent=23 // pred_fallthru
          _
        // Predicated region
        $region49: #{tpu_custom_call.1} parent=23 // pred_check
          %p418 = pneg %p243
        $region50: #{tpu_custom_call.1} parent=23 // pred_check_branch
          %420 = sbr.rel (%p418) target = $region52
        $region51: #{tpu_custom_call.1} parent=23 // pred_region
          %p421 = scmp.lt.s32.totalorder %s25, 1
          %s422 = scalar_select %p421, %s25, 1
          %s423 = scalar_lea.vmem %s8, %s422
        $region52: #{tpu_custom_call.1} parent=23 // pred_fallthru
          _
      $region24: #{tpu_custom_call.1} parent=5 // pred_fallthru
        _
      %p424 = scmp.le.s32.totalorder 1, %s25
      %p425 = scmp.lt.s32.totalorder %s25, 3
      %p426 = pnand %p424, %p425
      %p427 = pneg %p426
      // Predicated region
      $region53: #{tpu_custom_call.1} parent=5 // pred_check
        _
      $region54: #{tpu_custom_call.1} parent=5 // pred_check_branch
        %429 = sbr.rel (%p426) target = $region56
      $region55: #{tpu_custom_call.1} parent=5 // pred_region
        %s430 = ssub.s32 %s25, 1
        // Predicated region
        $region57: #{tpu_custom_call.1} parent=55 // pred_check
          %p431 = pneg %p46
        $region58: #{tpu_custom_call.1} parent=55 // pred_check_branch
          %433 = sbr.rel (%p431) target = $region60
        $region59: #{tpu_custom_call.1} parent=55 // pred_region
          %435 = dma.done [#allocation3], 128
        $region60: #{tpu_custom_call.1} parent=55 // pred_fallthru
          _
        %s436 = sand.u32 %s30, 1
        %s437 = scalar_lea.sflag [#allocation5], %s436
        %s438 = sand.u32 %s80, 1
        %s439 = smul.addr %s438, 36
        %s440 = scalar_lea.vmem [#allocation4], %s439
        // Predicated region
        $region61: #{tpu_custom_call.1} parent=55 // pred_check
          %p441 = pneg %p93
        $region62: #{tpu_custom_call.1} parent=55 // pred_check_branch
          %443 = sbr.rel (%p441) target = $region64
        $region63: #{tpu_custom_call.1} parent=55 // pred_region
          %445 = dma.done %s437, 576
        $region64: #{tpu_custom_call.1} parent=55 // pred_fallthru
          _
        %s446 = sand.u32 %s30, 1
        %s447 = scalar_lea.sflag [#allocation5], %s446
        %s448 = sand.u32 %s132, 1
        %s449 = smul.addr %s448, 3
        %s450 = scalar_lea.vmem [#allocation6], %s449
        // Predicated region
        $region65: #{tpu_custom_call.1} parent=55 // pred_check
          %p451 = pneg %p145
        $region66: #{tpu_custom_call.1} parent=55 // pred_check_branch
          %453 = sbr.rel (%p451) target = $region68
        $region67: #{tpu_custom_call.1} parent=55 // pred_region
          %455 = dma.done %s447, 48
        $region68: #{tpu_custom_call.1} parent=55 // pred_fallthru
          _
        %s456 = sand.u32 %s30, 1
        %s457 = scalar_lea.sflag [#allocation8], %s456
        %s458 = sand.u32 %s158, 1
        %s459 = smul.addr %s458, 768
        %s460 = scalar_lea.vmem [#allocation7], %s459
        // Predicated region
        $region69: #{tpu_custom_call.1} parent=55 // pred_check
          %p461 = pneg %p171
        $region70: #{tpu_custom_call.1} parent=55 // pred_check_branch
          %463 = sbr.rel (%p461) target = $region72
        $region71: #{tpu_custom_call.1} parent=55 // pred_region
          %465 = dma.done %s457, 12288
        $region72: #{tpu_custom_call.1} parent=55 // pred_fallthru
          _
        %s466 = sand.u32 %s30, 1
        %s467 = scalar_lea.sflag [#allocation8], %s466
        %s468 = sand.u32 %s184, 1
        %s469 = smul.addr %s468, 4
        %s470 = scalar_lea.vmem [#allocation9], %s469
        // Predicated region
        $region73: #{tpu_custom_call.1} parent=55 // pred_check
          %p471 = pneg %p197
        $region74: #{tpu_custom_call.1} parent=55 // pred_check_branch
          %473 = sbr.rel (%p471) target = $region76
        $region75: #{tpu_custom_call.1} parent=55 // pred_region
          %475 = dma.done %s467, 64
        $region76: #{tpu_custom_call.1} parent=55 // pred_fallthru
          _
        %s476 = sand.u32 %s210, 1
        %s477 = scalar_lea.sflag [#allocation11], %s476
        %s478 = sand.u32 %s210, 1
        %s479 = smul.addr %s478, 4
        %s480 = scalar_lea.vmem [#allocation10], %s479
        // Predicated region
        $region77: #{tpu_custom_call.1} parent=55 // pred_check
          %p481 = pneg %p223
        $region78: #{tpu_custom_call.1} parent=55 // pred_check_branch
          %483 = sbr.rel (%p481) target = $region80
        $region79: #{tpu_custom_call.1} parent=55 // pred_region
          %485 = dma.done %s477, 64
        $region80: #{tpu_custom_call.1} parent=55 // pred_fallthru
          _
        %p486 = pneg %p46
        %p487 = pneg %p43
        %p488 = pneg %p67
        %p489 = pneg %p64
        %s490 = sand.u32 %s30, 1
        %s491 = scalar_lea.sflag [#allocation5], %s490
        %s492 = sand.u32 %s80, 1
        %s493 = smul.addr %s492, 36
        %s494 = scalar_lea.vmem [#allocation4], %s493
        %p495 = pneg %p93
        %p496 = pneg %p90
        %p497 = scmp.lt.s32.totalorder %s30, 1
        %s498 = scalar_select %p497, %s30, 1
        %s499 = smul.addr %s498, 3
        %s500 = smul.addr %s499, 2
        %s501 = scalar_lea.vmem %s3, %s500
        %p502 = pneg %p119
        %p503 = pneg %p116
        %s504 = sand.u32 %s30, 1
        %s505 = scalar_lea.sflag [#allocation5], %s504
        %s506 = sand.u32 %s132, 1
        %s507 = smul.addr %s506, 3
        %s508 = scalar_lea.vmem [#allocation6], %s507
        %p509 = pneg %p145
        %p510 = pneg %p142
        %s511 = sand.u32 %s30, 1
        %s512 = scalar_lea.sflag [#allocation8], %s511
        %s513 = sand.u32 %s158, 1
        %s514 = smul.addr %s513, 768
        %s515 = scalar_lea.vmem [#allocation7], %s514
        %p516 = pneg %p171
        %p517 = pneg %p168
        %s518 = sand.u32 %s30, 1
        %s519 = scalar_lea.sflag [#allocation8], %s518
        %s520 = sand.u32 %s184, 1
        %s521 = smul.addr %s520, 4
        %s522 = scalar_lea.vmem [#allocation9], %s521
        %p523 = pneg %p197
        %p524 = pneg %p194
        %s525 = sand.u32 %s210, 1
        %s526 = scalar_lea.sflag [#allocation11], %s525
        %s527 = sand.u32 %s210, 1
        %s528 = smul.addr %s527, 4
        %s529 = scalar_lea.vmem [#allocation10], %s528
        %p530 = pneg %p223
        %p531 = pneg %p220
        %p532 = scmp.lt.s32.totalorder %s30, 1
        %s533 = scalar_select %p532, %s30, 1
        %s534 = scalar_lea.vmem %s8, %s533
        %p535 = pneg %p249
        %p536 = pneg %p246
        %p537 = pneg %p275
        %p538 = pneg %p272
        %p539 = scmp.lt.s32.totalorder %s30, 1
        %s540 = scalar_select %p539, %s30, 1
        %s541 = smul.addr %s540, 8
        %s542 = scalar_lea.vmem %s9, %s541
        %p543 = scmp.lt.s32.totalorder %s30, 1
        %s544 = scalar_select %p543, %s30, 1
        %s545 = smul.addr %s544, 3
        %s546 = smul.addr %s545, 2
        %s547 = scalar_lea.vmem %s3, %s546
        %p548 = scmp.lt.s32.totalorder %s30, 1
        %s549 = scalar_select %p548, %s30, 1
        %s550 = scalar_lea.vmem %s8, %s549
        %p551 = scmp.lt.s32.totalorder %s30, 1
        %s552 = scalar_select %p551, %s30, 1
        %s553 = smul.addr %s552, 8
        %s554 = scalar_lea.vmem %s9, %s553
        %v556 = vld [vmem:[#allocation2] sm:$0xff]
        %v557 = vpack.c.bf16 %v556, %v556
        %v558 = vld [vmem:[%s1] sm:$0xff]
        %v559 = vpack.c.bf16 %v558, %v558
        %v560 = vld [vmem:[%s440] sm:$0xff]
        %v561 = vld [vmem:[%s440 + $0x8] sm:$0xf]
        %v562 = vld [vmem:[%s440 + $0xc] sm:$0xff]
        %v563 = vld [vmem:[%s440 + $0x14] sm:$0xf]
        %v564 = vld [vmem:[%s440 + $0x18] sm:$0xff]
        %v565 = vld [vmem:[%s440 + $0x20] sm:$0xf]
        %v566 = vld [vmem:[%s547] sm:$0x3f]
        %568 = vst [vmem:[#allocation1] ss:$4 sm:$0xff] %v566
        %v569 = vld.sshfl [vmem:[#allocation1] sm:$0xff pattern:$0x73625140]
        %v570 = vld.sshfl [vmem:[#allocation1 + $0x8] sm:$0xff pattern:$0x73625140]
        %v571 = vld.sshfl [vmem:[#allocation1 + $0x10] sm:$0xff pattern:$0x73625140]
        %vm572 = vcmask 31744
        %v574 = vsel %vm572, %v559, 0
        %vm576 = vcmask 1041408
        %v577 = vsel %vm576, %v569, 0
        %v579 = vsel %vm576, %v570, 0
        %v581 = vsel %vm576, %v571, 0
        %583 = vmatpush.bf16.msra.mxu0 0
        %584 = vmatpush.bf16.msra.mxu0 0
        %585 = vmatpush.bf16.msra.mxu0 0
        %586 = vmatpush.bf16.msra.mxu0 0
        %587 = vmatpush.bf16.msra.mxu0 0
        %588 = vmatpush.bf16.msra.mxu0 0
        %589 = vmatpush.bf16.msra.mxu0 0
        %590 = vmatpush.bf16.msra.mxu0 %v577
        %591 = vmatmul.bf16.gmra.mxu0 %v574
        %v592 = vpop.f32.mrf.mxu0
        %v593 = vadd.f32 0.0, %v592
        %v594 = vpop.f32.mrf.mxu0
        %595 = vdwg.mxu0
        %596 = vmatpush.bf16.msra.mxu0 0
        %597 = vmatpush.bf16.msra.mxu0 0
        %598 = vmatpush.bf16.msra.mxu0 0
        %599 = vmatpush.bf16.msra.mxu0 0
        %600 = vmatpush.bf16.msra.mxu0 0
        %601 = vmatpush.bf16.msra.mxu0 0
        %602 = vmatpush.bf16.msra.mxu0 0
        %603 = vmatpush.bf16.msra.mxu0 %v579
        %604 = vmatmul.bf16.gmra.mxu0 %v574
        %v605 = vpop.f32.mrf.mxu0
        %v606 = vadd.f32 0.0, %v605
        %v607 = vpop.f32.mrf.mxu0
        %608 = vdwg.mxu0
        %609 = vmatpush.bf16.msra.mxu0 0
        %610 = vmatpush.bf16.msra.mxu0 0
        %611 = vmatpush.bf16.msra.mxu0 0
        %612 = vmatpush.bf16.msra.mxu0 0
        %613 = vmatpush.bf16.msra.mxu0 0
        %614 = vmatpush.bf16.msra.mxu0 0
        %615 = vmatpush.bf16.msra.mxu0 0
        %616 = vmatpush.bf16.msra.mxu0 %v581
        %617 = vmatmul.bf16.gmra.mxu0 %v574
        %v618 = vpop.f32.mrf.mxu0
        %v619 = vadd.f32 0.0, %v618
        %v620 = vpop.f32.mrf.mxu0
        %621 = vdwg.mxu0
        %v628 = vunpack.c.l.b16 %v560
        %v629 = vunpack.c.h.b16 %v560
        %v630 = vunpack.c.l.b16 %v561
        %v631 = vunpack.c.l.b16 %v562
        %v632 = vunpack.c.h.b16 %v562
        %v633 = vunpack.c.l.b16 %v563
        %v634 = vunpack.c.l.b16 %v564
        %v635 = vunpack.c.h.b16 %v564
        %v636 = vunpack.c.l.b16 %v565
        %v637 = vpack.c.b16 %v631, %v628
        %v638 = vpack.c.b16 %v632, %v629
        %v639 = vpack.c.b16 %v633, %v630
        %v640 = vpack.c.b16 %v634, %v634
        %v641 = vpack.c.b16 %v635, %v635
        %v642 = vpack.c.b16 %v636, %v636
        %vm646 = vcmask 195584
        %v648 = vsel %vm646, %v557, 0
        %vm650 = vcmask 1043456
        %v652 = vsel %vm650, %v640, 0
        %v655 = vsel %vm650, %v641, 0
        %v658 = vsel %vm650, %v642, 0
        %660 = vmatpush.bf16.msra.mxu0 0
        %661 = vmatpush.bf16.msra.mxu0 0
        %662 = vmatpush.bf16.msra.mxu0 0
        %663 = vmatpush.bf16.msra.mxu0 0
        %664 = vmatpush.bf16.msra.mxu0 0
        %665 = vmatpush.bf16.msra.mxu0 0
        %666 = vmatpush.bf16.msra.mxu0 %v652
        %667 = vmatpush.bf16.msra.mxu0 %v637
        %668 = vmatmul.bf16.gmra.mxu0 %v648
        %v669 = vpop.f32.mrf.mxu0
        %v670 = vadd.f32 %v593, %v669
        %v671 = vpop.f32.mrf.mxu0
        %672 = vdwg.mxu0
        %673 = vmatpush.bf16.msra.mxu0 0
        %674 = vmatpush.bf16.msra.mxu0 0
        %675 = vmatpush.bf16.msra.mxu0 0
        %676 = vmatpush.bf16.msra.mxu0 0
        %677 = vmatpush.bf16.msra.mxu0 0
        %678 = vmatpush.bf16.msra.mxu0 0
        %679 = vmatpush.bf16.msra.mxu0 %v655
        %680 = vmatpush.bf16.msra.mxu0 %v638
        %681 = vmatmul.bf16.gmra.mxu0 %v648
        %v682 = vpop.f32.mrf.mxu0
        %v683 = vadd.f32 %v606, %v682
        %v684 = vpop.f32.mrf.mxu0
        %685 = vdwg.mxu0
        %686 = vmatpush.bf16.msra.mxu0 0
        %687 = vmatpush.bf16.msra.mxu0 0
        %688 = vmatpush.bf16.msra.mxu0 0
        %689 = vmatpush.bf16.msra.mxu0 0
        %690 = vmatpush.bf16.msra.mxu0 0
        %691 = vmatpush.bf16.msra.mxu0 0
        %692 = vmatpush.bf16.msra.mxu0 %v658
        %693 = vmatpush.bf16.msra.mxu0 %v639
        %694 = vmatmul.bf16.gmra.mxu0 %v648
        %v695 = vpop.f32.mrf.mxu0
        %v696 = vadd.f32 %v619, %v695
        %v697 = vpop.f32.mrf.mxu0
        %698 = vdwg.mxu0
        %v699 = vld [vmem:[%s450] sm:$0x7]
        %v701 = vperm.slane %v699, 0
        %v702 = vperm.slane %v699, 1
        %v703 = vperm.slane %v699, 2
        %v707 = vadd.f32 %v670, %v701
        %v708 = vadd.f32 %v683, %v702
        %v709 = vadd.f32 %v696, %v703
        %v710 = vmax.f32 %v707, 0.0
        %v711 = vmax.f32 %v708, 0.0
        %v712 = vmax.f32 %v709, 0.0
        %v713 = vpack.c.bf16 %v710, %v710
        %v714 = vpack.c.bf16 %v711, %v711
        %v715 = vpack.c.bf16 %v712, %v712
        %v716 = vld [vmem:[%s460] sm:$0xff]
        %v717 = vld [vmem:[%s460 + $0x8] sm:$0xff]
        %v718 = vld [vmem:[%s460 + $0x10] sm:$0xff]
        %v719 = vld [vmem:[%s460 + $0x18] sm:$0xff]
        %v720 = vld [vmem:[%s460 + $0x20] sm:$0xff]
        %v721 = vld [vmem:[%s460 + $0x28] sm:$0xff]
        %v722 = vld [vmem:[%s460 + $0x30] sm:$0xff]
        %v723 = vld [vmem:[%s460 + $0x38] sm:$0xff]
        %v724 = vld [vmem:[%s460 + $0x40] sm:$0xff]
        %v725 = vld [vmem:[%s460 + $0x48] sm:$0xff]
        %v726 = vld [vmem:[%s460 + $0x50] sm:$0xff]
        %v727 = vld [vmem:[%s460 + $0x58] sm:$0xff]
        %v728 = vld [vmem:[%s460 + $0x60] sm:$0xff]
        %v729 = vld [vmem:[%s460 + $0x68] sm:$0xff]
        %v730 = vld [vmem:[%s460 + $0x70] sm:$0xff]
        %v731 = vld [vmem:[%s460 + $0x78] sm:$0xff]
        %v732 = vld [vmem:[%s460 + $0x80] sm:$0xff]
        %v733 = vld [vmem:[%s460 + $0x88] sm:$0xff]
        %v734 = vld [vmem:[%s460 + $0x90] sm:$0xff]
        %v735 = vld [vmem:[%s460 + $0x98] sm:$0xff]
        %v736 = vld [vmem:[%s460 + $0xa0] sm:$0xff]
        %v737 = vld [vmem:[%s460 + $0xa8] sm:$0xff]
        %v738 = vld [vmem:[%s460 + $0xb0] sm:$0xff]
        %v739 = vld [vmem:[%s460 + $0xb8] sm:$0xff]
        %v740 = vld [vmem:[%s460 + $0xc0] sm:$0xff]
        %v741 = vld [vmem:[%s460 + $0xc8] sm:$0xff]
        %v742 = vld [vmem:[%s460 + $0xd0] sm:$0xff]
        %v743 = vld [vmem:[%s460 + $0xd8] sm:$0xff]
        %v744 = vld [vmem:[%s460 + $0xe0] sm:$0xff]
        %v745 = vld [vmem:[%s460 + $0xe8] sm:$0xff]
        %v746 = vld [vmem:[%s460 + $0xf0] sm:$0xff]
        %v747 = vld [vmem:[%s460 + $0xf8] sm:$0xff]
        %v748 = vld [vmem:[%s460 + $0x100] sm:$0xff]
        %v749 = vld [vmem:[%s460 + $0x108] sm:$0xff]
        %v750 = vld [vmem:[%s460 + $0x110] sm:$0xff]
        %v751 = vld [vmem:[%s460 + $0x118] sm:$0xff]
        %v752 = vld [vmem:[%s460 + $0x120] sm:$0xff]
        %v753 = vld [vmem:[%s460 + $0x128] sm:$0xff]
        %v754 = vld [vmem:[%s460 + $0x130] sm:$0xff]
        %v755 = vld [vmem:[%s460 + $0x138] sm:$0xff]
        %v756 = vld [vmem:[%s460 + $0x140] sm:$0xff]
        %v757 = vld [vmem:[%s460 + $0x148] sm:$0xff]
        %v758 = vld [vmem:[%s460 + $0x150] sm:$0xff]
        %v759 = vld [vmem:[%s460 + $0x158] sm:$0xff]
        %v760 = vld [vmem:[%s460 + $0x160] sm:$0xff]
        %v761 = vld [vmem:[%s460 + $0x168] sm:$0xff]
        %v762 = vld [vmem:[%s460 + $0x170] sm:$0xff]
        %v763 = vld [vmem:[%s460 + $0x178] sm:$0xff]
        %v764 = vld [vmem:[%s460 + $0x180] sm:$0xff]
        %v765 = vld [vmem:[%s460 + $0x188] sm:$0xff]
        %v766 = vld [vmem:[%s460 + $0x190] sm:$0xff]
        %v767 = vld [vmem:[%s460 + $0x198] sm:$0xff]
        %v768 = vld [vmem:[%s460 + $0x1a0] sm:$0xff]
        %v769 = vld [vmem:[%s460 + $0x1a8] sm:$0xff]
        %v770 = vld [vmem:[%s460 + $0x1b0] sm:$0xff]
        %v771 = vld [vmem:[%s460 + $0x1b8] sm:$0xff]
        %v772 = vld [vmem:[%s460 + $0x1c0] sm:$0xff]
        %v773 = vld [vmem:[%s460 + $0x1c8] sm:$0xff]
        %v774 = vld [vmem:[%s460 + $0x1d0] sm:$0xff]
        %v775 = vld [vmem:[%s460 + $0x1d8] sm:$0xff]
        %v776 = vld [vmem:[%s460 + $0x1e0] sm:$0xff]
        %v777 = vld [vmem:[%s460 + $0x1e8] sm:$0xff]
        %v778 = vld [vmem:[%s460 + $0x1f0] sm:$0xff]
        %v779 = vld [vmem:[%s460 + $0x1f8] sm:$0xff]
        %v780 = vld [vmem:[%s460 + $0x200] sm:$0xff]
        %v781 = vld [vmem:[%s460 + $0x208] sm:$0xff]
        %v782 = vld [vmem:[%s460 + $0x210] sm:$0xff]
        %v783 = vld [vmem:[%s460 + $0x218] sm:$0xff]
        %v784 = vld [vmem:[%s460 + $0x220] sm:$0xff]
        %v785 = vld [vmem:[%s460 + $0x228] sm:$0xff]
        %v786 = vld [vmem:[%s460 + $0x230] sm:$0xff]
        %v787 = vld [vmem:[%s460 + $0x238] sm:$0xff]
        %v788 = vld [vmem:[%s460 + $0x240] sm:$0xff]
        %v789 = vld [vmem:[%s460 + $0x248] sm:$0xff]
        %v790 = vld [vmem:[%s460 + $0x250] sm:$0xff]
        %v791 = vld [vmem:[%s460 + $0x258] sm:$0xff]
        %v792 = vld [vmem:[%s460 + $0x260] sm:$0xff]
        %v793 = vld [vmem:[%s460 + $0x268] sm:$0xff]
        %v794 = vld [vmem:[%s460 + $0x270] sm:$0xff]
        %v795 = vld [vmem:[%s460 + $0x278] sm:$0xff]
        %v796 = vld [vmem:[%s460 + $0x280] sm:$0xff]
        %v797 = vld [vmem:[%s460 + $0x288] sm:$0xff]
        %v798 = vld [vmem:[%s460 + $0x290] sm:$0xff]
        %v799 = vld [vmem:[%s460 + $0x298] sm:$0xff]
        %v800 = vld [vmem:[%s460 + $0x2a0] sm:$0xff]
        %v801 = vld [vmem:[%s460 + $0x2a8] sm:$0xff]
        %v802 = vld [vmem:[%s460 + $0x2b0] sm:$0xff]
        %v803 = vld [vmem:[%s460 + $0x2b8] sm:$0xff]
        %v804 = vld [vmem:[%s460 + $0x2c0] sm:$0xff]
        %v805 = vld [vmem:[%s460 + $0x2c8] sm:$0xff]
        %v806 = vld [vmem:[%s460 + $0x2d0] sm:$0xff]
        %v807 = vld [vmem:[%s460 + $0x2d8] sm:$0xff]
        %v808 = vld [vmem:[%s460 + $0x2e0] sm:$0xff]
        %v809 = vld [vmem:[%s460 + $0x2e8] sm:$0xff]
        %v810 = vld [vmem:[%s460 + $0x2f0] sm:$0xff]
        %v811 = vld [vmem:[%s460 + $0x2f8] sm:$0xff]
        %v812 = vld [vmem:[%s470] sm:$0xf]
        %v814 = vperm.slane %v812, 0
        %v815 = vperm.slane %v812, 1
        %v816 = vperm.slane %v812, 2
        %v817 = vperm.slane %v812, 3
        %v918 = vunpack.c.l.b16 %v716
        %v919 = vunpack.c.h.b16 %v716
        %v920 = vunpack.c.l.b16 %v717
        %v921 = vunpack.c.h.b16 %v717
        %v922 = vunpack.c.l.b16 %v718
        %v923 = vunpack.c.h.b16 %v718
        %v924 = vunpack.c.l.b16 %v719
        %v925 = vunpack.c.h.b16 %v719
        %v926 = vunpack.c.l.b16 %v720
        %v927 = vunpack.c.h.b16 %v720
        %v928 = vunpack.c.l.b16 %v721
        %v929 = vunpack.c.h.b16 %v721
        %v930 = vunpack.c.l.b16 %v722
        %v931 = vunpack.c.h.b16 %v722
        %v932 = vunpack.c.l.b16 %v723
        %v933 = vunpack.c.h.b16 %v723
        %v934 = vunpack.c.l.b16 %v724
        %v935 = vunpack.c.h.b16 %v724
        %v936 = vunpack.c.l.b16 %v725
        %v937 = vunpack.c.h.b16 %v725
        %v938 = vunpack.c.l.b16 %v726
        %v939 = vunpack.c.h.b16 %v726
        %v940 = vunpack.c.l.b16 %v727
        %v941 = vunpack.c.h.b16 %v727
        %v942 = vunpack.c.l.b16 %v728
        %v943 = vunpack.c.h.b16 %v728
        %v944 = vunpack.c.l.b16 %v729
        %v945 = vunpack.c.h.b16 %v729
        %v946 = vunpack.c.l.b16 %v730
        %v947 = vunpack.c.h.b16 %v730
        %v948 = vunpack.c.l.b16 %v731
        %v949 = vunpack.c.h.b16 %v731
        %v950 = vunpack.c.l.b16 %v732
        %v951 = vunpack.c.h.b16 %v732
        %v952 = vunpack.c.l.b16 %v733
        %v953 = vunpack.c.h.b16 %v733
        %v954 = vunpack.c.l.b16 %v734
        %v955 = vunpack.c.h.b16 %v734
        %v956 = vunpack.c.l.b16 %v735
        %v957 = vunpack.c.h.b16 %v735
        %v958 = vunpack.c.l.b16 %v736
        %v959 = vunpack.c.h.b16 %v736
        %v960 = vunpack.c.l.b16 %v737
        %v961 = vunpack.c.h.b16 %v737
        %v962 = vunpack.c.l.b16 %v738
        %v963 = vunpack.c.h.b16 %v738
        %v964 = vunpack.c.l.b16 %v739
        %v965 = vunpack.c.h.b16 %v739
        %v966 = vunpack.c.l.b16 %v740
        %v967 = vunpack.c.h.b16 %v740
        %v968 = vunpack.c.l.b16 %v741
        %v969 = vunpack.c.h.b16 %v741
        %v970 = vunpack.c.l.b16 %v742
        %v971 = vunpack.c.h.b16 %v742
        %v972 = vunpack.c.l.b16 %v743
        %v973 = vunpack.c.h.b16 %v743
        %v974 = vunpack.c.l.b16 %v744
        %v975 = vunpack.c.h.b16 %v744
        %v976 = vunpack.c.l.b16 %v745
        %v977 = vunpack.c.h.b16 %v745
        %v978 = vunpack.c.l.b16 %v746
        %v979 = vunpack.c.h.b16 %v746
        %v980 = vunpack.c.l.b16 %v747
        %v981 = vunpack.c.h.b16 %v747
        %v982 = vunpack.c.l.b16 %v748
        %v983 = vunpack.c.h.b16 %v748
        %v984 = vunpack.c.l.b16 %v749
        %v985 = vunpack.c.h.b16 %v749
        %v986 = vunpack.c.l.b16 %v750
        %v987 = vunpack.c.h.b16 %v750
        %v988 = vunpack.c.l.b16 %v751
        %v989 = vunpack.c.h.b16 %v751
        %v990 = vunpack.c.l.b16 %v752
        %v991 = vunpack.c.h.b16 %v752
        %v992 = vunpack.c.l.b16 %v753
        %v993 = vunpack.c.h.b16 %v753
        %v994 = vunpack.c.l.b16 %v754
        %v995 = vunpack.c.h.b16 %v754
        %v996 = vunpack.c.l.b16 %v755
        %v997 = vunpack.c.h.b16 %v755
        %v998 = vunpack.c.l.b16 %v756
        %v999 = vunpack.c.h.b16 %v756
        %v1000 = vunpack.c.l.b16 %v757
        %v1001 = vunpack.c.h.b16 %v757
        %v1002 = vunpack.c.l.b16 %v758
        %v1003 = vunpack.c.h.b16 %v758
        %v1004 = vunpack.c.l.b16 %v759
        %v1005 = vunpack.c.h.b16 %v759
        %v1006 = vunpack.c.l.b16 %v760
        %v1007 = vunpack.c.h.b16 %v760
        %v1008 = vunpack.c.l.b16 %v761
        %v1009 = vunpack.c.h.b16 %v761
        %v1010 = vunpack.c.l.b16 %v762
        %v1011 = vunpack.c.h.b16 %v762
        %v1012 = vunpack.c.l.b16 %v763
        %v1013 = vunpack.c.h.b16 %v763
        %v1014 = vunpack.c.l.b16 %v764
        %v1015 = vunpack.c.h.b16 %v764
        %v1016 = vunpack.c.l.b16 %v765
        %v1017 = vunpack.c.h.b16 %v765
        %v1018 = vunpack.c.l.b16 %v766
        %v1019 = vunpack.c.h.b16 %v766
        %v1020 = vunpack.c.l.b16 %v767
        %v1021 = vunpack.c.h.b16 %v767
        %v1022 = vunpack.c.l.b16 %v768
        %v1023 = vunpack.c.h.b16 %v768
        %v1024 = vunpack.c.l.b16 %v769
        %v1025 = vunpack.c.h.b16 %v769
        %v1026 = vunpack.c.l.b16 %v770
        %v1027 = vunpack.c.h.b16 %v770
        %v1028 = vunpack.c.l.b16 %v771
        %v1029 = vunpack.c.h.b16 %v771
        %v1030 = vunpack.c.l.b16 %v772
        %v1031 = vunpack.c.h.b16 %v772
        %v1032 = vunpack.c.l.b16 %v773
        %v1033 = vunpack.c.h.b16 %v773
        %v1034 = vunpack.c.l.b16 %v774
        %v1035 = vunpack.c.h.b16 %v774
        %v1036 = vunpack.c.l.b16 %v775
        %v1037 = vunpack.c.h.b16 %v775
        %v1038 = vunpack.c.l.b16 %v776
        %v1039 = vunpack.c.h.b16 %v776
        %v1040 = vunpack.c.l.b16 %v777
        %v1041 = vunpack.c.h.b16 %v777
        %v1042 = vunpack.c.l.b16 %v778
        %v1043 = vunpack.c.h.b16 %v778
        %v1044 = vunpack.c.l.b16 %v779
        %v1045 = vunpack.c.h.b16 %v779
        %v1046 = vunpack.c.l.b16 %v780
        %v1047 = vunpack.c.h.b16 %v780
        %v1048 = vunpack.c.l.b16 %v781
        %v1049 = vunpack.c.h.b16 %v781
        %v1050 = vunpack.c.l.b16 %v782
        %v1051 = vunpack.c.h.b16 %v782
        %v1052 = vunpack.c.l.b16 %v783
        %v1053 = vunpack.c.h.b16 %v783
        %v1054 = vunpack.c.l.b16 %v784
        %v1055 = vunpack.c.h.b16 %v784
        %v1056 = vunpack.c.l.b16 %v785
        %v1057 = vunpack.c.h.b16 %v785
        %v1058 = vunpack.c.l.b16 %v786
        %v1059 = vunpack.c.h.b16 %v786
        %v1060 = vunpack.c.l.b16 %v787
        %v1061 = vunpack.c.h.b16 %v787
        %v1062 = vunpack.c.l.b16 %v788
        %v1063 = vunpack.c.h.b16 %v788
        %v1064 = vunpack.c.l.b16 %v789
        %v1065 = vunpack.c.h.b16 %v789
        %v1066 = vunpack.c.l.b16 %v790
        %v1067 = vunpack.c.h.b16 %v790
        %v1068 = vunpack.c.l.b16 %v791
        %v1069 = vunpack.c.h.b16 %v791
        %v1070 = vunpack.c.l.b16 %v792
        %v1071 = vunpack.c.h.b16 %v792
        %v1072 = vunpack.c.l.b16 %v793
        %v1073 = vunpack.c.h.b16 %v793
        %v1074 = vunpack.c.l.b16 %v794
        %v1075 = vunpack.c.h.b16 %v794
        %v1076 = vunpack.c.l.b16 %v795
        %v1077 = vunpack.c.h.b16 %v795
        %v1078 = vunpack.c.l.b16 %v796
        %v1079 = vunpack.c.h.b16 %v796
        %v1080 = vunpack.c.l.b16 %v797
        %v1081 = vunpack.c.h.b16 %v797
        %v1082 = vunpack.c.l.b16 %v798
        %v1083 = vunpack.c.h.b16 %v798
        %v1084 = vunpack.c.l.b16 %v799
        %v1085 = vunpack.c.h.b16 %v799
        %v1086 = vunpack.c.l.b16 %v800
        %v1087 = vunpack.c.h.b16 %v800
        %v1088 = vunpack.c.l.b16 %v801
        %v1089 = vunpack.c.h.b16 %v801
        %v1090 = vunpack.c.l.b16 %v802
        %v1091 = vunpack.c.h.b16 %v802
        %v1092 = vunpack.c.l.b16 %v803
        %v1093 = vunpack.c.h.b16 %v803
        %v1094 = vunpack.c.l.b16 %v804
        %v1095 = vunpack.c.h.b16 %v804
        %v1096 = vunpack.c.l.b16 %v805
        %v1097 = vunpack.c.h.b16 %v805
        %v1098 = vunpack.c.l.b16 %v806
        %v1099 = vunpack.c.h.b16 %v806
        %v1100 = vunpack.c.l.b16 %v807
        %v1101 = vunpack.c.h.b16 %v807
        %v1102 = vunpack.c.l.b16 %v808
        %v1103 = vunpack.c.h.b16 %v808
        %v1104 = vunpack.c.l.b16 %v809
        %v1105 = vunpack.c.h.b16 %v809
        %v1106 = vunpack.c.l.b16 %v810
        %v1107 = vunpack.c.h.b16 %v810
        %v1108 = vunpack.c.l.b16 %v811
        %v1109 = vunpack.c.h.b16 %v811
        %v1110 = vpack.c.b16 %v922, %v918
        %v1111 = vpack.c.b16 %v923, %v919
        %v1112 = vpack.c.b16 %v924, %v920
        %v1113 = vpack.c.b16 %v925, %v921
        %v1114 = vpack.c.b16 %v930, %v926
        %v1115 = vpack.c.b16 %v931, %v927
        %v1116 = vpack.c.b16 %v932, %v928
        %v1117 = vpack.c.b16 %v933, %v929
        %v1118 = vpack.c.b16 %v938, %v934
        %v1119 = vpack.c.b16 %v939, %v935
        %v1120 = vpack.c.b16 %v940, %v936
        %v1121 = vpack.c.b16 %v941, %v937
        %v1122 = vpack.c.b16 %v946, %v942
        %v1123 = vpack.c.b16 %v947, %v943
        %v1124 = vpack.c.b16 %v948, %v944
        %v1125 = vpack.c.b16 %v949, %v945
        %v1126 = vpack.c.b16 %v954, %v950
        %v1127 = vpack.c.b16 %v955, %v951
        %v1128 = vpack.c.b16 %v956, %v952
        %v1129 = vpack.c.b16 %v957, %v953
        %v1130 = vpack.c.b16 %v962, %v958
        %v1131 = vpack.c.b16 %v963, %v959
        %v1132 = vpack.c.b16 %v964, %v960
        %v1133 = vpack.c.b16 %v965, %v961
        %v1134 = vpack.c.b16 %v970, %v966
        %v1135 = vpack.c.b16 %v971, %v967
        %v1136 = vpack.c.b16 %v972, %v968
        %v1137 = vpack.c.b16 %v973, %v969
        %v1138 = vpack.c.b16 %v978, %v974
        %v1139 = vpack.c.b16 %v979, %v975
        %v1140 = vpack.c.b16 %v980, %v976
        %v1141 = vpack.c.b16 %v981, %v977
        %v1142 = vpack.c.b16 %v986, %v982
        %v1143 = vpack.c.b16 %v987, %v983
        %v1144 = vpack.c.b16 %v988, %v984
        %v1145 = vpack.c.b16 %v989, %v985
        %v1146 = vpack.c.b16 %v994, %v990
        %v1147 = vpack.c.b16 %v995, %v991
        %v1148 = vpack.c.b16 %v996, %v992
        %v1149 = vpack.c.b16 %v997, %v993
        %v1150 = vpack.c.b16 %v1002, %v998
        %v1151 = vpack.c.b16 %v1003, %v999
        %v1152 = vpack.c.b16 %v1004, %v1000
        %v1153 = vpack.c.b16 %v1005, %v1001
        %v1154 = vpack.c.b16 %v1010, %v1006
        %v1155 = vpack.c.b16 %v1011, %v1007
        %v1156 = vpack.c.b16 %v1012, %v1008
        %v1157 = vpack.c.b16 %v1013, %v1009
        %v1158 = vpack.c.b16 %v1018, %v1014
        %v1159 = vpack.c.b16 %v1019, %v1015
        %v1160 = vpack.c.b16 %v1020, %v1016
        %v1161 = vpack.c.b16 %v1021, %v1017
        %v1162 = vpack.c.b16 %v1026, %v1022
        %v1163 = vpack.c.b16 %v1027, %v1023
        %v1164 = vpack.c.b16 %v1028, %v1024
        %v1165 = vpack.c.b16 %v1029, %v1025
        %v1166 = vpack.c.b16 %v1034, %v1030
        %v1167 = vpack.c.b16 %v1035, %v1031
        %v1168 = vpack.c.b16 %v1036, %v1032
        %v1169 = vpack.c.b16 %v1037, %v1033
        %v1170 = vpack.c.b16 %v1042, %v1038
        %v1171 = vpack.c.b16 %v1043, %v1039
        %v1172 = vpack.c.b16 %v1044, %v1040
        %v1173 = vpack.c.b16 %v1045, %v1041
        %v1174 = vpack.c.b16 %v1050, %v1046
        %v1175 = vpack.c.b16 %v1051, %v1047
        %v1176 = vpack.c.b16 %v1052, %v1048
        %v1177 = vpack.c.b16 %v1053, %v1049
        %v1178 = vpack.c.b16 %v1058, %v1054
        %v1179 = vpack.c.b16 %v1059, %v1055
        %v1180 = vpack.c.b16 %v1060, %v1056
        %v1181 = vpack.c.b16 %v1061, %v1057
        %v1182 = vpack.c.b16 %v1066, %v1062
        %v1183 = vpack.c.b16 %v1067, %v1063
        %v1184 = vpack.c.b16 %v1068, %v1064
        %v1185 = vpack.c.b16 %v1069, %v1065
        %v1186 = vpack.c.b16 %v1074, %v1070
        %v1187 = vpack.c.b16 %v1075, %v1071
        %v1188 = vpack.c.b16 %v1076, %v1072
        %v1189 = vpack.c.b16 %v1077, %v1073
        %v1190 = vpack.c.b16 %v1082, %v1078
        %v1191 = vpack.c.b16 %v1083, %v1079
        %v1192 = vpack.c.b16 %v1084, %v1080
        %v1193 = vpack.c.b16 %v1085, %v1081
        %v1194 = vpack.c.b16 %v1090, %v1086
        %v1195 = vpack.c.b16 %v1091, %v1087
        %v1196 = vpack.c.b16 %v1092, %v1088
        %v1197 = vpack.c.b16 %v1093, %v1089
        %v1198 = vpack.c.b16 %v1098, %v1094
        %v1199 = vpack.c.b16 %v1099, %v1095
        %v1200 = vpack.c.b16 %v1100, %v1096
        %v1201 = vpack.c.b16 %v1101, %v1097
        %v1202 = vpack.c.b16 %v1106, %v1102
        %v1203 = vpack.c.b16 %v1107, %v1103
        %v1204 = vpack.c.b16 %v1108, %v1104
        %v1205 = vpack.c.b16 %v1109, %v1105
        %1302 = vmatpush.bf16.msra.mxu0 %v1138
        %1303 = vmatpush.bf16.msra.mxu0 %v1134
        %1304 = vmatpush.bf16.msra.mxu0 %v1130
        %1305 = vmatpush.bf16.msra.mxu0 %v1126
        %1306 = vmatpush.bf16.msra.mxu0 %v1122
        %1307 = vmatpush.bf16.msra.mxu0 %v1118
        %1308 = vmatpush.bf16.msra.mxu0 %v1114
        %1309 = vmatpush.bf16.msra.mxu0 %v1110
        %1310 = vmatmul.bf16.gmra.mxu0 %v713
        %v1311 = vpop.f32.mrf.mxu0
        %v1312 = vadd.f32 %v814, %v1311
        %v1313 = vpop.f32.mrf.mxu0
        %1314 = vdwg.mxu0
        %1315 = vmatpush.bf16.msra.mxu0 %v1170
        %1316 = vmatpush.bf16.msra.mxu0 %v1166
        %1317 = vmatpush.bf16.msra.mxu0 %v1162
        %1318 = vmatpush.bf16.msra.mxu0 %v1158
        %1319 = vmatpush.bf16.msra.mxu0 %v1154
        %1320 = vmatpush.bf16.msra.mxu0 %v1150
        %1321 = vmatpush.bf16.msra.mxu0 %v1146
        %1322 = vmatpush.bf16.msra.mxu0 %v1142
        %1323 = vmatmul.bf16.gmra.mxu0 %v714
        %v1324 = vpop.f32.mrf.mxu0
        %v1325 = vadd.f32 %v1312, %v1324
        %v1326 = vpop.f32.mrf.mxu0
        %1327 = vdwg.mxu0
        %1328 = vmatpush.bf16.msra.mxu0 %v1202
        %1329 = vmatpush.bf16.msra.mxu0 %v1198
        %1330 = vmatpush.bf16.msra.mxu0 %v1194
        %1331 = vmatpush.bf16.msra.mxu0 %v1190
        %1332 = vmatpush.bf16.msra.mxu0 %v1186
        %1333 = vmatpush.bf16.msra.mxu0 %v1182
        %1334 = vmatpush.bf16.msra.mxu0 %v1178
        %1335 = vmatpush.bf16.msra.mxu0 %v1174
        %1336 = vmatmul.bf16.gmra.mxu0 %v715
        %v1337 = vpop.f32.mrf.mxu0
        %v1338 = vadd.f32 %v1325, %v1337
        %v1339 = vpop.f32.mrf.mxu0
        %1340 = vdwg.mxu0
        %1341 = vmatpush.bf16.msra.mxu0 %v1139
        %1342 = vmatpush.bf16.msra.mxu0 %v1135
        %1343 = vmatpush.bf16.msra.mxu0 %v1131
        %1344 = vmatpush.bf16.msra.mxu0 %v1127
        %1345 = vmatpush.bf16.msra.mxu0 %v1123
        %1346 = vmatpush.bf16.msra.mxu0 %v1119
        %1347 = vmatpush.bf16.msra.mxu0 %v1115
        %1348 = vmatpush.bf16.msra.mxu0 %v1111
        %1349 = vmatmul.bf16.gmra.mxu0 %v713
        %v1350 = vpop.f32.mrf.mxu0
        %v1351 = vadd.f32 %v815, %v1350
        %v1352 = vpop.f32.mrf.mxu0
        %1353 = vdwg.mxu0
        %1354 = vmatpush.bf16.msra.mxu0 %v1171
        %1355 = vmatpush.bf16.msra.mxu0 %v1167
        %1356 = vmatpush.bf16.msra.mxu0 %v1163
        %1357 = vmatpush.bf16.msra.mxu0 %v1159
        %1358 = vmatpush.bf16.msra.mxu0 %v1155
        %1359 = vmatpush.bf16.msra.mxu0 %v1151
        %1360 = vmatpush.bf16.msra.mxu0 %v1147
        %1361 = vmatpush.bf16.msra.mxu0 %v1143
        %1362 = vmatmul.bf16.gmra.mxu0 %v714
        %v1363 = vpop.f32.mrf.mxu0
        %v1364 = vadd.f32 %v1351, %v1363
        %v1365 = vpop.f32.mrf.mxu0
        %1366 = vdwg.mxu0
        %1367 = vmatpush.bf16.msra.mxu0 %v1203
        %1368 = vmatpush.bf16.msra.mxu0 %v1199
        %1369 = vmatpush.bf16.msra.mxu0 %v1195
        %1370 = vmatpush.bf16.msra.mxu0 %v1191
        %1371 = vmatpush.bf16.msra.mxu0 %v1187
        %1372 = vmatpush.bf16.msra.mxu0 %v1183
        %1373 = vmatpush.bf16.msra.mxu0 %v1179
        %1374 = vmatpush.bf16.msra.mxu0 %v1175
        %1375 = vmatmul.bf16.gmra.mxu0 %v715
        %v1376 = vpop.f32.mrf.mxu0
        %v1377 = vadd.f32 %v1364, %v1376
        %v1378 = vpop.f32.mrf.mxu0
        %1379 = vdwg.mxu0
        %1380 = vmatpush.bf16.msra.mxu0 %v1140
        %1381 = vmatpush.bf16.msra.mxu0 %v1136
        %1382 = vmatpush.bf16.msra.mxu0 %v1132
        %1383 = vmatpush.bf16.msra.mxu0 %v1128
        %1384 = vmatpush.bf16.msra.mxu0 %v1124
        %1385 = vmatpush.bf16.msra.mxu0 %v1120
        %1386 = vmatpush.bf16.msra.mxu0 %v1116
        %1387 = vmatpush.bf16.msra.mxu0 %v1112
        %1388 = vmatmul.bf16.gmra.mxu0 %v713
        %v1389 = vpop.f32.mrf.mxu0
        %v1390 = vadd.f32 %v816, %v1389
        %v1391 = vpop.f32.mrf.mxu0
        %1392 = vdwg.mxu0
        %1393 = vmatpush.bf16.msra.mxu0 %v1172
        %1394 = vmatpush.bf16.msra.mxu0 %v1168
        %1395 = vmatpush.bf16.msra.mxu0 %v1164
        %1396 = vmatpush.bf16.msra.mxu0 %v1160
        %1397 = vmatpush.bf16.msra.mxu0 %v1156
        %1398 = vmatpush.bf16.msra.mxu0 %v1152
        %1399 = vmatpush.bf16.msra.mxu0 %v1148
        %1400 = vmatpush.bf16.msra.mxu0 %v1144
        %1401 = vmatmul.bf16.gmra.mxu0 %v714
        %v1402 = vpop.f32.mrf.mxu0
        %v1403 = vadd.f32 %v1390, %v1402
        %v1404 = vpop.f32.mrf.mxu0
        %1405 = vdwg.mxu0
        %1406 = vmatpush.bf16.msra.mxu0 %v1204
        %1407 = vmatpush.bf16.msra.mxu0 %v1200
        %1408 = vmatpush.bf16.msra.mxu0 %v1196
        %1409 = vmatpush.bf16.msra.mxu0 %v1192
        %1410 = vmatpush.bf16.msra.mxu0 %v1188
        %1411 = vmatpush.bf16.msra.mxu0 %v1184
        %1412 = vmatpush.bf16.msra.mxu0 %v1180
        %1413 = vmatpush.bf16.msra.mxu0 %v1176
        %1414 = vmatmul.bf16.gmra.mxu0 %v715
        %v1415 = vpop.f32.mrf.mxu0
        %v1416 = vadd.f32 %v1403, %v1415
        %v1417 = vpop.f32.mrf.mxu0
        %1418 = vdwg.mxu0
        %1419 = vmatpush.bf16.msra.mxu0 %v1141
        %1420 = vmatpush.bf16.msra.mxu0 %v1137
        %1421 = vmatpush.bf16.msra.mxu0 %v1133
        %1422 = vmatpush.bf16.msra.mxu0 %v1129
        %1423 = vmatpush.bf16.msra.mxu0 %v1125
        %1424 = vmatpush.bf16.msra.mxu0 %v1121
        %1425 = vmatpush.bf16.msra.mxu0 %v1117
        %1426 = vmatpush.bf16.msra.mxu0 %v1113
        %1427 = vmatmul.bf16.gmra.mxu0 %v713
        %v1428 = vpop.f32.mrf.mxu0
        %v1429 = vadd.f32 %v817, %v1428
        %v1430 = vpop.f32.mrf.mxu0
        %1431 = vdwg.mxu0
        %1432 = vmatpush.bf16.msra.mxu0 %v1173
        %1433 = vmatpush.bf16.msra.mxu0 %v1169
        %1434 = vmatpush.bf16.msra.mxu0 %v1165
        %1435 = vmatpush.bf16.msra.mxu0 %v1161
        %1436 = vmatpush.bf16.msra.mxu0 %v1157
        %1437 = vmatpush.bf16.msra.mxu0 %v1153
        %1438 = vmatpush.bf16.msra.mxu0 %v1149
        %1439 = vmatpush.bf16.msra.mxu0 %v1145
        %1440 = vmatmul.bf16.gmra.mxu0 %v714
        %v1441 = vpop.f32.mrf.mxu0
        %v1442 = vadd.f32 %v1429, %v1441
        %v1443 = vpop.f32.mrf.mxu0
        %1444 = vdwg.mxu0
        %1445 = vmatpush.bf16.msra.mxu0 %v1205
        %1446 = vmatpush.bf16.msra.mxu0 %v1201
        %1447 = vmatpush.bf16.msra.mxu0 %v1197
        %1448 = vmatpush.bf16.msra.mxu0 %v1193
        %1449 = vmatpush.bf16.msra.mxu0 %v1189
        %1450 = vmatpush.bf16.msra.mxu0 %v1185
        %1451 = vmatpush.bf16.msra.mxu0 %v1181
        %1452 = vmatpush.bf16.msra.mxu0 %v1177
        %1453 = vmatmul.bf16.gmra.mxu0 %v715
        %v1454 = vpop.f32.mrf.mxu0
        %v1455 = vadd.f32 %v1442, %v1454
        %v1456 = vpop.f32.mrf.mxu0
        %1457 = vdwg.mxu0
        %v1458 = vmax.f32 %v1338, 0.0
        %v1459 = vmax.f32 %v1377, 0.0
        %v1460 = vmax.f32 %v1416, 0.0
        %v1461 = vmax.f32 %v1455, 0.0
        %v1462 = vld [vmem:[%s480] sm:$0xf]
        %v1464 = vperm.slane %v1462, 0
        %v1465 = vperm.slane %v1462, 1
        %v1466 = vperm.slane %v1462, 2
        %v1467 = vperm.slane %v1462, 3
        %v1472 = vmul.f32 %v1458, %v1464
        %v1473 = vmul.f32 %v1459, %v1465
        %v1474 = vmul.f32 %v1460, %v1466
        %v1475 = vmul.f32 %v1461, %v1467
        %v1476 = vadd.f32 %v1472, %v1473
        %v1477 = vadd.f32 %v1476, %v1474
        %v1478 = vadd.f32 %v1477, %v1475
        %1479 = vadd.xlane.f32.xlu0 %v1478
        %v1480 = vpop.xlane.xlu0 %1479
        %v1481 = vld [vmem:[%s550] sm:$0x1]
        %v1483 = vperm.slane %v1481, 0
        %v1485 = vadd.f32 %v1480, %v1483
        %vm1486 = vcmask 7168
        %1487 = vst.msk [vmem:[%s554] sm:$0xff] %vm1486, %v1485
        %p1488 = scmp.lt.s32.totalorder %s30, 1
        %s1489 = scalar_select %p1488, %s30, 1
        %s1490 = smul.addr %s1489, 8
        %s1491 = scalar_lea.vmem %s9, %s1490
        // Predicated region
        $region81: #{tpu_custom_call.1} parent=55 // pred_check
          %p1492 = pneg %p272
        $region82: #{tpu_custom_call.1} parent=55 // pred_check_branch
          %1494 = sbr.rel (%p1492) target = $region84
        $region83: #{tpu_custom_call.1} parent=55 // pred_region
          _
        $region84: #{tpu_custom_call.1} parent=55 // pred_fallthru
          _
      $region56: #{tpu_custom_call.1} parent=5 // pred_fallthru
        _
      %p1495 = scmp.le.s32.totalorder 2, %s25
      // Predicated region
      $region85: #{tpu_custom_call.1} parent=5 // pred_check
        %p1496 = pneg %p1495
      $region86: #{tpu_custom_call.1} parent=5 // pred_check_branch
        %1498 = sbr.rel (%p1496) target = $region88
      $region87: #{tpu_custom_call.1} parent=5 // pred_region
        %s1499 = ssub.s32 %s25, 2
        // Predicated region
        $region89: #{tpu_custom_call.1} parent=87 // pred_check
          %p1500 = pneg %p278
        $region90: #{tpu_custom_call.1} parent=87 // pred_check_branch
          %1502 = sbr.rel (%p1500) target = $region92
        $region91: #{tpu_custom_call.1} parent=87 // pred_region
          %p1503 = scmp.lt.s32.totalorder %s31, 1
          %s1504 = scalar_select %p1503, %s31, 1
          %s1505 = smul.addr %s1504, 8
          %s1506 = scalar_lea.vmem %s9, %s1505
        $region92: #{tpu_custom_call.1} parent=87 // pred_fallthru
          _
      $region88: #{tpu_custom_call.1} parent=5 // pred_fallthru
        _
    $region6: #{tpu_custom_call.1} parent=1 // loop_footer
      %s29 = sadd.s32 1, %s25
    $region7: #{tpu_custom_call.1} parent=1 // loop_footer_branch
      %24 = sbr.rel target = $region3
    $region8: #{tpu_custom_call.1} parent=1 // loop_exit
      _
    %1507 = vsyncpa [#allocation3], 1
    %s1508 = scalar_lea.sflag [#allocation3], 1
    %1509 = vsyncpa %s1508, 1
    %1510 = vsyncpa [#allocation5], 1
    %s1511 = scalar_lea.sflag [#allocation5], 1
    %1512 = vsyncpa %s1511, 1
    %1513 = vsyncpa [#allocation8], 1
    %s1514 = scalar_lea.sflag [#allocation8], 1
    %1515 = vsyncpa %s1514, 1
    %1516 = vsyncpa [#allocation11], 1
    %s1517 = scalar_lea.sflag [#allocation11], 1
    %1518 = vsyncpa %s1517, 1

</llo_original>
